<compile_context>
chip_gen: v7x
topology: tpu7x:2x2x1
jax: 0.10.0
libtpu: 0.0.40
codegen_flags: <defaults>
</compile_context>

<pallas_src>
import math

import jax
import jax.numpy as jnp
from jax import lax
from jax.experimental import pallas as pl
from jax.experimental.pallas import tpu as pltpu

# ----------------------------- config ------------------------------------- #
VOCAB = 22          # vocab_size
EMB = 22            # word_embedding_size (ALBERT factorized embedding dim)
HID = 128           # encoding_dim / hidden_size
INTER = 256         # intermediate_size
HEADS = 4           # num_attention_heads
HEAD_DIM = HID // HEADS
LAYERS = 1          # num_hidden_layers (weights shared across layers in ALBERT)
MAXPOS = 1000       # max_length
SEQ = 8
BATCH = 2
EPS = 1e-12         # AlbertConfig.layer_norm_eps


# --------------------------- shared helpers -------------------------------- #
def _layernorm(x, g, b):
    mu = jnp.mean(x, axis=-1, keepdims=True)
    var = jnp.mean((x - mu) ** 2, axis=-1, keepdims=True)
    return (x - mu) * lax.rsqrt(var + EPS) * g + b


def _gelu_new(x):
    c = math.sqrt(2.0 / math.pi)
    return 0.5 * x * (1.0 + jnp.tanh(c * (x + 0.044715 * x * x * x)))


# ------------------------------ kernel ------------------------------------- #
def albert_kernel(h_ref, bias_ref,
                  w_qkv, b_qkv, wo, bo, ln_a_g, ln_a_b,
                  w_f1, b_f1, w_f2, b_f2, ln_f_g, ln_f_b,
                  w_p, b_p,
                  out_ref, ctx_ref):
    bf16 = jnp.bfloat16
    BS = h_ref.shape[0]
    B = out_ref.shape[0]
    S = BS // B

    h = h_ref[...]                 # (B*S, HID) f32 hidden states
    bias = bias_ref[...]           # (B*S, B*S) f32 block-diagonal additive mask
    scale = 1.0 / math.sqrt(HEAD_DIM)

    # ALBERT shares one parameter set across layers; LAYERS == 1 here.
    # (If LAYERS is scaled up, switch this to lax.fori_loop over a carried h.)
    for _ in range(LAYERS):
        # --- fused QKV projection: one (BS,128)x(128,384) bf16 MXU pass ----
        qkv = jnp.dot(h.astype(bf16), w_qkv[...],
                      preferred_element_type=jnp.float32) + b_qkv[0]
        q = qkv[:, :HID]
        k = qkv[:, HID:2 * HID]
        v = qkv[:, 2 * HID:]

        # --- per-head attention; contexts written straight into VMEM scratch
        for hi in range(HEADS):
            s0 = hi * HEAD_DIM
            qh = q[:, s0:s0 + HEAD_DIM].astype(bf16)
            kh = k[:, s0:s0 + HEAD_DIM].astype(bf16)
            vh = v[:, s0:s0 + HEAD_DIM].astype(bf16)
            s = lax.dot_general(qh, kh, (((1,), (1,)), ((), ())),
                                preferred_element_type=jnp.float32)
            s = s * scale + bias                       # shapes match; no bcast
            m = jnp.max(s, axis=-1, keepdims=True)
            e = jnp.exp(s - m)
            p = e * pl.reciprocal(jnp.sum(e, axis=-1, keepdims=True),
                                  approx=True)
            ctx_ref[:, s0:s0 + HEAD_DIM] = jnp.dot(
                p.astype(bf16), vh, preferred_element_type=jnp.float32)
        ctx = ctx_ref[...]                             # (BS, HID)

        # --- attention output projection + LayerNorm -----------------------
        proj = jnp.dot(ctx.astype(bf16), wo[...],
                       preferred_element_type=jnp.float32) + bo[0]
        h = _layernorm(h + proj, ln_a_g[0], ln_a_b[0])

        # --- FFN (gelu_new) + LayerNorm ------------------------------------
        f = jnp.dot(h.astype(bf16), w_f1[...],
                    preferred_element_type=jnp.float32) + b_f1[0]
        f = _gelu_new(f)
        f = jnp.dot(f.astype(bf16), w_f2[...],
                    preferred_element_type=jnp.float32) + b_f2[0]
        h = _layernorm(f + h, ln_f_g[0], ln_f_b[0])

    # --- pooler: Linear + tanh on each sequence's [CLS] token --------------
    cls = jnp.concatenate([h[b * S:b * S + 1, :] for b in range(B)], axis=0)
    pooled = jnp.tanh(jnp.dot(cls.astype(bf16), w_p[...],
                              preferred_element_type=jnp.float32) + b_p[0])
    out_ref[...] = pooled


# ------------------------------ wrapper ------------------------------------ #
_W_ORDER = ["w_qkv", "b_qkv", "wo", "bo", "ln_a_g", "ln_a_b",
            "w_f1", "b_f1", "w_f2", "b_f2", "ln_f_g", "ln_f_b",
            "w_p", "b_p"]


def _full_spec(a):
    nd = a.ndim
    return pl.BlockSpec(a.shape, lambda i, _nd=nd: (0,) * _nd)


def albert_encoder_pallas(input_ids, params):
    B, S = input_ids.shape
    BS = B * S

    # ---- plain-JAX glue (tiny / unaligned ops kept out of the kernel) -----
    # attention_mask = (input_seqs > 0)  ->  additive bias (1-mask)*-1e4,
    # extended to a (BS, BS) block-diagonal bias so merged-batch attention
    # equals per-batch attention (cross-batch entries underflow to prob 0).
    mask = (input_ids > 0).astype(jnp.float32)                     # (B, S)
    tok_bias = ((1.0 - mask) * -10000.0).reshape(BS)               # (BS,)
    batch_ids = jnp.repeat(jnp.arange(B), S)                       # (BS,)
    same_batch = batch_ids[:, None] == batch_ids[None, :]
    bias_full = jnp.where(same_batch, tok_bias[None, :],
                          -1e9).astype(jnp.float32)                # (BS, BS)

    # Embedding gather (word + position + token_type=0), embedding LayerNorm
    # and the unaligned EMB(22)->HID(128) projection, all in f32 JAX.
    pos = jnp.arange(S)
    emb = (params["word_emb"][input_ids]
           + params["pos_emb"][pos][None, :, :]
           + params["type_emb"][0][None, None, :]).astype(jnp.float32)
    x = _layernorm(emb, params["ln_e_g"][0], params["ln_e_b"][0])
    h0 = (x @ params["w_map"] + params["b_map"][0]
          ).reshape(BS, HID).astype(jnp.float32)                   # (BS, 128)

    # Fused QKV; matmul weights in bf16 (half the DMA bytes, bf16 MXU path).
    bf = jnp.bfloat16
    kw = {
        "w_qkv": jnp.concatenate(
            [params["wq"], params["wk"], params["wv"]], axis=1).astype(bf),
        "b_qkv": jnp.concatenate(
            [params["bq"], params["bk"], params["bv"]], axis=1),
        "wo": params["wo"].astype(bf), "bo": params["bo"],
        "ln_a_g": params["ln_a_g"], "ln_a_b": params["ln_a_b"],
        "w_f1": params["w_f1"].astype(bf), "b_f1": params["b_f1"],
        "w_f2": params["w_f2"].astype(bf), "b_f2": params["b_f2"],
        "ln_f_g": params["ln_f_g"], "ln_f_b": params["ln_f_b"],
        "w_p": params["w_p"].astype(bf), "b_p": params["b_p"],
    }
    weights = [kw[k] for k in _W_ORDER]

    in_specs = ([pl.BlockSpec((BS, HID), lambda i: (0, 0)),   # hidden states
                 pl.BlockSpec((BS, BS), lambda i: (0, 0))]    # attention bias
                + [_full_spec(w) for w in weights])

    out = pl.pallas_call(
        albert_kernel,
        out_shape=jax.ShapeDtypeStruct((B, HID), jnp.float32),
        grid=(1,),                                   # single invocation
        in_specs=in_specs,
        out_specs=pl.BlockSpec((B, HID), lambda i: (0, 0)),
        scratch_shapes=[pltpu.VMEM((BS, HID), jnp.float32)],  # per-head ctx
        compiler_params=pltpu.CompilerParams(
            dimension_semantics=("arbitrary",)),
    )(h0, bias_full, *weights)
    return out                                       # pooled_output (B, HID)


# --------------------------- pure-JAX reference ----------------------------- #
def albert_encoder_ref(input_ids, p):
    B, S = input_ids.shape
    mask = (input_ids > 0).astype(jnp.float32)
    bias = (1.0 - mask) * -10000.0
    emb = (p["word_emb"][input_ids]
           + p["pos_emb"][:S][None]
           + p["type_emb"][0][None, None])
    x = _layernorm(emb, p["ln_e_g"][0], p["ln_e_b"][0])
    h = x @ p["w_map"] + p["b_map"][0]
    scale = 1.0 / math.sqrt(HEAD_DIM)
    for _ in range(LAYERS):
        q = (h @ p["wq"] + p["bq"][0]).reshape(B, S, HEADS, HEAD_DIM).transpose(0, 2, 1, 3)
        k = (h @ p["wk"] + p["bk"][0]).reshape(B, S, HEADS, HEAD_DIM).transpose(0, 2, 1, 3)
        v = (h @ p["wv"] + p["bv"][0]).reshape(B, S, HEADS, HEAD_DIM).transpose(0, 2, 1, 3)
        scores = jnp.einsum("bhqd,bhkd->bhqk", q, k) * scale + bias[:, None, None, :]
        prob = jax.nn.softmax(scores, axis=-1)
        ctx = jnp.einsum("bhqk,bhkd->bhqd", prob, v).transpose(0, 2, 1, 3).reshape(B, S, HID)
        h = _layernorm(h + ctx @ p["wo"] + p["bo"][0], p["ln_a_g"][0], p["ln_a_b"][0])
        f = _gelu_new(h @ p["w_f1"] + p["b_f1"][0]) @ p["w_f2"] + p["b_f2"][0]
        h = _layernorm(f + h, p["ln_f_g"][0], p["ln_f_b"][0])
    return jnp.tanh(h[:, 0] @ p["w_p"] + p["b_p"][0])


# ------------------------------ param init --------------------------------- #
def init_params(key):
    def nrm(k, shape, scale=0.02):
        return scale * jax.random.normal(k, shape, jnp.float32)

    names_shapes = {
        "word_emb": (VOCAB, EMB),
        "pos_emb": (MAXPOS, EMB),
        "type_emb": (2, EMB),
        "ln_e_g": (1, EMB), "ln_e_b": (1, EMB),
        "w_map": (EMB, HID), "b_map": (1, HID),
        "wq": (HID, HID), "bq": (1, HID),
        "wk": (HID, HID), "bk": (1, HID),
        "wv": (HID, HID), "bv": (1, HID),
        "wo": (HID, HID), "bo": (1, HID),
        "ln_a_g": (1, HID), "ln_a_b": (1, HID),
        "w_f1": (HID, INTER), "b_f1": (1, INTER),
        "w_f2": (INTER, HID), "b_f2": (1, HID),
        "ln_f_g": (1, HID), "ln_f_b": (1, HID),
        "w_p": (HID, HID), "b_p": (1, HID),
    }
    keys = jax.random.split(key, len(names_shapes))
    params = {}
    for (name, shape), k in zip(names_shapes.items(), keys):
        if name.endswith("_g"):           # LayerNorm gamma ~ 1
            params[name] = 1.0 + nrm(k, shape, 0.01)
        elif name.startswith("b") or name.endswith("_b"):  # biases small
            params[name] = nrm(k, shape, 0.01)
        else:
            params[name] = nrm(k, shape, 0.02)
    return params


# --------------------------------- main ------------------------------------ #
if __name__ == "__main__":
    root = jax.random.PRNGKey(0)
    k_ids, k_params = jax.random.split(root)

    input_seqs = jax.random.randint(k_ids, (BATCH, SEQ), 0, VOCAB, dtype=jnp.int32)
    params = init_params(k_params)

    pooled = albert_encoder_pallas(input_seqs, params)
    pooled = jax.block_until_ready(pooled)

    ref = jax.block_until_ready(albert_encoder_ref(input_seqs, params))
    assert pooled.shape == (BATCH, HID)
    assert jnp.allclose(pooled, ref, atol=2e-2, rtol=2e-2), (
        f"max abs diff {jnp.max(jnp.abs(pooled - ref))}")

    print("KERNEL_OK")
</pallas_src>

<mosaic_0001>
module attributes {stable_mosaic.version = 11 : i64} {
  func.func @albert_kernel(%arg0: i32, %arg1: memref<16x128xf32, #tpu.memory_space<vmem>>, %arg2: memref<16x16xf32, #tpu.memory_space<vmem>>, %arg3: memref<128x384xbf16, #tpu.memory_space<vmem>>, %arg4: memref<1x384xf32, #tpu.memory_space<vmem>>, %arg5: memref<128x128xbf16, #tpu.memory_space<vmem>>, %arg6: memref<1x128xf32, #tpu.memory_space<vmem>>, %arg7: memref<1x128xf32, #tpu.memory_space<vmem>>, %arg8: memref<1x128xf32, #tpu.memory_space<vmem>>, %arg9: memref<128x256xbf16, #tpu.memory_space<vmem>>, %arg10: memref<1x256xf32, #tpu.memory_space<vmem>>, %arg11: memref<256x128xbf16, #tpu.memory_space<vmem>>, %arg12: memref<1x128xf32, #tpu.memory_space<vmem>>, %arg13: memref<1x128xf32, #tpu.memory_space<vmem>>, %arg14: memref<1x128xf32, #tpu.memory_space<vmem>>, %arg15: memref<128x128xbf16, #tpu.memory_space<vmem>>, %arg16: memref<1x128xf32, #tpu.memory_space<vmem>>, %arg17: memref<2x128xf32, #tpu.memory_space<vmem>>, %arg18: memref<16x128xf32, #tpu.memory_space<vmem>>) attributes {dimension_semantics = [#tpu.dimension_semantics<arbitrary>], iteration_bounds = array<i64: 1>, scalar_prefetch = 0 : i64, scratch_operands = 1 : i64, tpu.core_type = #tpu.core_type<tc>, window_params = [{pipeline_mode = #tpu.pipeline_mode<synchronous>, transform_indices = @transform_0, window_bounds = array<i64: 16, 128>}, {pipeline_mode = #tpu.pipeline_mode<synchronous>, transform_indices = @transform_1, window_bounds = array<i64: 16, 16>}, {pipeline_mode = #tpu.pipeline_mode<synchronous>, transform_indices = @transform_2, window_bounds = array<i64: 128, 384>}, {pipeline_mode = #tpu.pipeline_mode<synchronous>, transform_indices = @transform_3, window_bounds = array<i64: 1, 384>}, {pipeline_mode = #tpu.pipeline_mode<synchronous>, transform_indices = @transform_4, window_bounds = array<i64: 128, 128>}, {pipeline_mode = #tpu.pipeline_mode<synchronous>, transform_indices = @transform_5, window_bounds = array<i64: 1, 128>}, {pipeline_mode = #tpu.pipeline_mode<synchronous>, transform_indices = @transform_6, window_bounds = array<i64: 1, 128>}, {pipeline_mode = #tpu.pipeline_mode<synchronous>, transform_indices = @transform_7, window_bounds = array<i64: 1, 128>}, {pipeline_mode = #tpu.pipeline_mode<synchronous>, transform_indices = @transform_8, window_bounds = array<i64: 128, 256>}, {pipeline_mode = #tpu.pipeline_mode<synchronous>, transform_indices = @transform_9, window_bounds = array<i64: 1, 256>}, {pipeline_mode = #tpu.pipeline_mode<synchronous>, transform_indices = @transform_10, window_bounds = array<i64: 256, 128>}, {pipeline_mode = #tpu.pipeline_mode<synchronous>, transform_indices = @transform_11, window_bounds = array<i64: 1, 128>}, {pipeline_mode = #tpu.pipeline_mode<synchronous>, transform_indices = @transform_12, window_bounds = array<i64: 1, 128>}, {pipeline_mode = #tpu.pipeline_mode<synchronous>, transform_indices = @transform_13, window_bounds = array<i64: 1, 128>}, {pipeline_mode = #tpu.pipeline_mode<synchronous>, transform_indices = @transform_14, window_bounds = array<i64: 128, 128>}, {pipeline_mode = #tpu.pipeline_mode<synchronous>, transform_indices = @transform_15, window_bounds = array<i64: 1, 128>}, {pipeline_mode = #tpu.pipeline_mode<synchronous>, transform_indices = @transform_16, window_bounds = array<i64: 2, 128>}]} {
    %c0 = arith.constant 0 : index
    %c0_0 = arith.constant 0 : index
    %0 = vector.load %arg1[%c0, %c0_0] : memref<16x128xf32, #tpu.memory_space<vmem>>, vector<16x128xf32>
    %c0_1 = arith.constant 0 : index
    %c0_2 = arith.constant 0 : index
    %1 = vector.load %arg2[%c0_1, %c0_2] : memref<16x16xf32, #tpu.memory_space<vmem>>, vector<16x16xf32>
    %2 = arith.truncf %0 : vector<16x128xf32> to vector<16x128xbf16>
    %c0_3 = arith.constant 0 : index
    %c0_4 = arith.constant 0 : index
    %3 = vector.load %arg3[%c0_3, %c0_4] : memref<128x384xbf16, #tpu.memory_space<vmem>>, vector<128x384xbf16>
    %cst = arith.constant dense<0.000000e+00> : vector<16x384xf32>
    %4 = tpu.matmul %2, %3, %cst {dimension_numbers = #tpu.dot_dimension_numbers<[1], [0], [0], [1], [0, 0, 1, 1], [], []>} : vector<16x128xbf16>, vector<128x384xbf16>, vector<16x384xf32> -> vector<16x384xf32>
    %c0_5 = arith.constant 0 : index
    %c0_6 = arith.constant 0 : index
    %5 = vector.load %arg4[%c0_5, %c0_6] : memref<1x384xf32, #tpu.memory_space<vmem>>, vector<1x384xf32>
    %6 = vector.shape_cast %5 : vector<1x384xf32> to vector<384xf32>
    %7 = vector.shape_cast %6 : vector<384xf32> to vector<1x384xf32>
    %8 = vector.broadcast %7 : vector<1x384xf32> to vector<16x384xf32>
    %9 = arith.addf %4, %8 : vector<16x384xf32>
    %10 = vector.extract_strided_slice %9 {offsets = [0, 0], sizes = [16, 128], strides = [1, 1]} : vector<16x384xf32> to vector<16x128xf32>
    %11 = vector.extract_strided_slice %9 {offsets = [0, 128], sizes = [16, 128], strides = [1, 1]} : vector<16x384xf32> to vector<16x128xf32>
    %12 = vector.extract_strided_slice %9 {offsets = [0, 256], sizes = [16, 128], strides = [1, 1]} : vector<16x384xf32> to vector<16x128xf32>
    %13 = vector.extract_strided_slice %10 {offsets = [0, 0], sizes = [16, 32], strides = [1, 1]} : vector<16x128xf32> to vector<16x32xf32>
    %14 = arith.truncf %13 : vector<16x32xf32> to vector<16x32xbf16>
    %15 = vector.extract_strided_slice %11 {offsets = [0, 0], sizes = [16, 32], strides = [1, 1]} : vector<16x128xf32> to vector<16x32xf32>
    %16 = arith.truncf %15 : vector<16x32xf32> to vector<16x32xbf16>
    %17 = vector.extract_strided_slice %12 {offsets = [0, 0], sizes = [16, 32], strides = [1, 1]} : vector<16x128xf32> to vector<16x32xf32>
    %18 = arith.truncf %17 : vector<16x32xf32> to vector<16x32xbf16>
    %cst_7 = arith.constant dense<0.000000e+00> : vector<16x16xf32>
    %19 = tpu.matmul %14, %16, %cst_7 {dimension_numbers = #tpu.dot_dimension_numbers<[1], [1], [0], [0], [0, 0, 1, 0], [], []>} : vector<16x32xbf16>, vector<16x32xbf16>, vector<16x16xf32> -> vector<16x16xf32>
    %cst_8 = arith.constant 0.176776692 : f32
    %20 = vector.broadcast %cst_8 : f32 to vector<16x16xf32>
    %21 = arith.mulf %19, %20 : vector<16x16xf32>
    %22 = arith.addf %21, %1 : vector<16x16xf32>
    %cst_9 = arith.constant dense<0xFF800000> : vector<16xf32>
    %23 = vector.multi_reduction <maximumf>, %22, %cst_9 [1] : vector<16x16xf32> to vector<16xf32>
    %24 = vector.shape_cast %23 : vector<16xf32> to vector<16x1xf32>
    %25 = vector.broadcast %24 : vector<16x1xf32> to vector<16x16xf32>
    %26 = arith.subf %22, %25 : vector<16x16xf32>
    %27 = math.exp %26 : vector<16x16xf32>
    %cst_10 = arith.constant dense<0.000000e+00> : vector<16xf32>
    %28 = vector.multi_reduction <add>, %27, %cst_10 [1] : vector<16x16xf32> to vector<16xf32>
    %29 = vector.shape_cast %28 : vector<16xf32> to vector<16x1xf32>
    %30 = tpu.reciprocal %29 {approx = true} : vector<16x1xf32> -> vector<16x1xf32>
    %31 = vector.broadcast %30 : vector<16x1xf32> to vector<16x16xf32>
    %32 = arith.mulf %27, %31 : vector<16x16xf32>
    %33 = arith.truncf %32 : vector<16x16xf32> to vector<16x16xbf16>
    %cst_11 = arith.constant dense<0.000000e+00> : vector<16x32xf32>
    %34 = tpu.matmul %33, %18, %cst_11 {dimension_numbers = #tpu.dot_dimension_numbers<[1], [0], [0], [1], [0, 0, 1, 1], [], []>} : vector<16x16xbf16>, vector<16x32xbf16>, vector<16x32xf32> -> vector<16x32xf32>
    %c0_12 = arith.constant 0 : index
    %c0_13 = arith.constant 0 : index
    %35 = vector.load %arg18[%c0_12, %c0_13] : memref<16x128xf32, #tpu.memory_space<vmem>>, vector<16x32xf32>
    tpu.vector_store %arg18[%c0_12, %c0_13], %34 {strides = array<i32>} : memref<16x128xf32, #tpu.memory_space<vmem>>, vector<16x32xf32>,
    %36 = vector.extract_strided_slice %10 {offsets = [0, 32], sizes = [16, 32], strides = [1, 1]} : vector<16x128xf32> to vector<16x32xf32>
    %37 = arith.truncf %36 : vector<16x32xf32> to vector<16x32xbf16>
    %38 = vector.extract_strided_slice %11 {offsets = [0, 32], sizes = [16, 32], strides = [1, 1]} : vector<16x128xf32> to vector<16x32xf32>
    %39 = arith.truncf %38 : vector<16x32xf32> to vector<16x32xbf16>
    %40 = vector.extract_strided_slice %12 {offsets = [0, 32], sizes = [16, 32], strides = [1, 1]} : vector<16x128xf32> to vector<16x32xf32>
    %41 = arith.truncf %40 : vector<16x32xf32> to vector<16x32xbf16>
    %cst_14 = arith.constant dense<0.000000e+00> : vector<16x16xf32>
    %42 = tpu.matmul %37, %39, %cst_14 {dimension_numbers = #tpu.dot_dimension_numbers<[1], [1], [0], [0], [0, 0, 1, 0], [], []>} : vector<16x32xbf16>, vector<16x32xbf16>, vector<16x16xf32> -> vector<16x16xf32>
    %cst_15 = arith.constant 0.176776692 : f32
    %43 = vector.broadcast %cst_15 : f32 to vector<16x16xf32>
    %44 = arith.mulf %42, %43 : vector<16x16xf32>
    %45 = arith.addf %44, %1 : vector<16x16xf32>
    %cst_16 = arith.constant dense<0xFF800000> : vector<16xf32>
    %46 = vector.multi_reduction <maximumf>, %45, %cst_16 [1] : vector<16x16xf32> to vector<16xf32>
    %47 = vector.shape_cast %46 : vector<16xf32> to vector<16x1xf32>
    %48 = vector.broadcast %47 : vector<16x1xf32> to vector<16x16xf32>
    %49 = arith.subf %45, %48 : vector<16x16xf32>
    %50 = math.exp %49 : vector<16x16xf32>
    %cst_17 = arith.constant dense<0.000000e+00> : vector<16xf32>
    %51 = vector.multi_reduction <add>, %50, %cst_17 [1] : vector<16x16xf32> to vector<16xf32>
    %52 = vector.shape_cast %51 : vector<16xf32> to vector<16x1xf32>
    %53 = tpu.reciprocal %52 {approx = true} : vector<16x1xf32> -> vector<16x1xf32>
    %54 = vector.broadcast %53 : vector<16x1xf32> to vector<16x16xf32>
    %55 = arith.mulf %50, %54 : vector<16x16xf32>
    %56 = arith.truncf %55 : vector<16x16xf32> to vector<16x16xbf16>
    %cst_18 = arith.constant dense<0.000000e+00> : vector<16x32xf32>
    %57 = tpu.matmul %56, %41, %cst_18 {dimension_numbers = #tpu.dot_dimension_numbers<[1], [0], [0], [1], [0, 0, 1, 1], [], []>} : vector<16x16xbf16>, vector<16x32xbf16>, vector<16x32xf32> -> vector<16x32xf32>
    %c0_19 = arith.constant 0 : index
    %c32 = arith.constant 32 : index
    %58 = vector.load %arg18[%c0_19, %c32] : memref<16x128xf32, #tpu.memory_space<vmem>>, vector<16x32xf32>
    tpu.vector_store %arg18[%c0_19, %c32], %57 {strides = array<i32>} : memref<16x128xf32, #tpu.memory_space<vmem>>, vector<16x32xf32>,
    %59 = vector.extract_strided_slice %10 {offsets = [0, 64], sizes = [16, 32], strides = [1, 1]} : vector<16x128xf32> to vector<16x32xf32>
    %60 = arith.truncf %59 : vector<16x32xf32> to vector<16x32xbf16>
    %61 = vector.extract_strided_slice %11 {offsets = [0, 64], sizes = [16, 32], strides = [1, 1]} : vector<16x128xf32> to vector<16x32xf32>
    %62 = arith.truncf %61 : vector<16x32xf32> to vector<16x32xbf16>
    %63 = vector.extract_strided_slice %12 {offsets = [0, 64], sizes = [16, 32], strides = [1, 1]} : vector<16x128xf32> to vector<16x32xf32>
    %64 = arith.truncf %63 : vector<16x32xf32> to vector<16x32xbf16>
    %cst_20 = arith.constant dense<0.000000e+00> : vector<16x16xf32>
    %65 = tpu.matmul %60, %62, %cst_20 {dimension_numbers = #tpu.dot_dimension_numbers<[1], [1], [0], [0], [0, 0, 1, 0], [], []>} : vector<16x32xbf16>, vector<16x32xbf16>, vector<16x16xf32> -> vector<16x16xf32>
    %cst_21 = arith.constant 0.176776692 : f32
    %66 = vector.broadcast %cst_21 : f32 to vector<16x16xf32>
    %67 = arith.mulf %65, %66 : vector<16x16xf32>
    %68 = arith.addf %67, %1 : vector<16x16xf32>
    %cst_22 = arith.constant dense<0xFF800000> : vector<16xf32>
    %69 = vector.multi_reduction <maximumf>, %68, %cst_22 [1] : vector<16x16xf32> to vector<16xf32>
    %70 = vector.shape_cast %69 : vector<16xf32> to vector<16x1xf32>
    %71 = vector.broadcast %70 : vector<16x1xf32> to vector<16x16xf32>
    %72 = arith.subf %68, %71 : vector<16x16xf32>
    %73 = math.exp %72 : vector<16x16xf32>
    %cst_23 = arith.constant dense<0.000000e+00> : vector<16xf32>
    %74 = vector.multi_reduction <add>, %73, %cst_23 [1] : vector<16x16xf32> to vector<16xf32>
    %75 = vector.shape_cast %74 : vector<16xf32> to vector<16x1xf32>
    %76 = tpu.reciprocal %75 {approx = true} : vector<16x1xf32> -> vector<16x1xf32>
    %77 = vector.broadcast %76 : vector<16x1xf32> to vector<16x16xf32>
    %78 = arith.mulf %73, %77 : vector<16x16xf32>
    %79 = arith.truncf %78 : vector<16x16xf32> to vector<16x16xbf16>
    %cst_24 = arith.constant dense<0.000000e+00> : vector<16x32xf32>
    %80 = tpu.matmul %79, %64, %cst_24 {dimension_numbers = #tpu.dot_dimension_numbers<[1], [0], [0], [1], [0, 0, 1, 1], [], []>} : vector<16x16xbf16>, vector<16x32xbf16>, vector<16x32xf32> -> vector<16x32xf32>
    %c0_25 = arith.constant 0 : index
    %c64 = arith.constant 64 : index
    %81 = vector.load %arg18[%c0_25, %c64] : memref<16x128xf32, #tpu.memory_space<vmem>>, vector<16x32xf32>
    tpu.vector_store %arg18[%c0_25, %c64], %80 {strides = array<i32>} : memref<16x128xf32, #tpu.memory_space<vmem>>, vector<16x32xf32>,
    %82 = vector.extract_strided_slice %10 {offsets = [0, 96], sizes = [16, 32], strides = [1, 1]} : vector<16x128xf32> to vector<16x32xf32>
    %83 = arith.truncf %82 : vector<16x32xf32> to vector<16x32xbf16>
    %84 = vector.extract_strided_slice %11 {offsets = [0, 96], sizes = [16, 32], strides = [1, 1]} : vector<16x128xf32> to vector<16x32xf32>
    %85 = arith.truncf %84 : vector<16x32xf32> to vector<16x32xbf16>
    %86 = vector.extract_strided_slice %12 {offsets = [0, 96], sizes = [16, 32], strides = [1, 1]} : vector<16x128xf32> to vector<16x32xf32>
    %87 = arith.truncf %86 : vector<16x32xf32> to vector<16x32xbf16>
    %cst_26 = arith.constant dense<0.000000e+00> : vector<16x16xf32>
    %88 = tpu.matmul %83, %85, %cst_26 {dimension_numbers = #tpu.dot_dimension_numbers<[1], [1], [0], [0], [0, 0, 1, 0], [], []>} : vector<16x32xbf16>, vector<16x32xbf16>, vector<16x16xf32> -> vector<16x16xf32>
    %cst_27 = arith.constant 0.176776692 : f32
    %89 = vector.broadcast %cst_27 : f32 to vector<16x16xf32>
    %90 = arith.mulf %88, %89 : vector<16x16xf32>
    %91 = arith.addf %90, %1 : vector<16x16xf32>
    %cst_28 = arith.constant dense<0xFF800000> : vector<16xf32>
    %92 = vector.multi_reduction <maximumf>, %91, %cst_28 [1] : vector<16x16xf32> to vector<16xf32>
    %93 = vector.shape_cast %92 : vector<16xf32> to vector<16x1xf32>
    %94 = vector.broadcast %93 : vector<16x1xf32> to vector<16x16xf32>
    %95 = arith.subf %91, %94 : vector<16x16xf32>
    %96 = math.exp %95 : vector<16x16xf32>
    %cst_29 = arith.constant dense<0.000000e+00> : vector<16xf32>
    %97 = vector.multi_reduction <add>, %96, %cst_29 [1] : vector<16x16xf32> to vector<16xf32>
    %98 = vector.shape_cast %97 : vector<16xf32> to vector<16x1xf32>
    %99 = tpu.reciprocal %98 {approx = true} : vector<16x1xf32> -> vector<16x1xf32>
    %100 = vector.broadcast %99 : vector<16x1xf32> to vector<16x16xf32>
    %101 = arith.mulf %96, %100 : vector<16x16xf32>
    %102 = arith.truncf %101 : vector<16x16xf32> to vector<16x16xbf16>
    %cst_30 = arith.constant dense<0.000000e+00> : vector<16x32xf32>
    %103 = tpu.matmul %102, %87, %cst_30 {dimension_numbers = #tpu.dot_dimension_numbers<[1], [0], [0], [1], [0, 0, 1, 1], [], []>} : vector<16x16xbf16>, vector<16x32xbf16>, vector<16x32xf32> -> vector<16x32xf32>
    %c0_31 = arith.constant 0 : index
    %c96 = arith.constant 96 : index
    %104 = vector.load %arg18[%c0_31, %c96] : memref<16x128xf32, #tpu.memory_space<vmem>>, vector<16x32xf32>
    tpu.vector_store %arg18[%c0_31, %c96], %103 {strides = array<i32>} : memref<16x128xf32, #tpu.memory_space<vmem>>, vector<16x32xf32>,
    %c0_32 = arith.constant 0 : index
    %c0_33 = arith.constant 0 : index
    %105 = vector.load %arg18[%c0_32, %c0_33] : memref<16x128xf32, #tpu.memory_space<vmem>>, vector<16x128xf32>
    %106 = arith.truncf %105 : vector<16x128xf32> to vector<16x128xbf16>
    %c0_34 = arith.constant 0 : index
    %c0_35 = arith.constant 0 : index
    %107 = vector.load %arg5[%c0_34, %c0_35] : memref<128x128xbf16, #tpu.memory_space<vmem>>, vector<128x128xbf16>
    %cst_36 = arith.constant dense<0.000000e+00> : vector<16x128xf32>
    %108 = tpu.matmul %106, %107, %cst_36 {dimension_numbers = #tpu.dot_dimension_numbers<[1], [0], [0], [1], [0, 0, 1, 1], [], []>} : vector<16x128xbf16>, vector<128x128xbf16>, vector<16x128xf32> -> vector<16x128xf32>
    %c0_37 = arith.constant 0 : index
    %c0_38 = arith.constant 0 : index
    %109 = vector.load %arg6[%c0_37, %c0_38] : memref<1x128xf32, #tpu.memory_space<vmem>>, vector<1x128xf32>
    %110 = vector.shape_cast %109 : vector<1x128xf32> to vector<128xf32>
    %111 = vector.shape_cast %110 : vector<128xf32> to vector<1x128xf32>
    %112 = vector.broadcast %111 : vector<1x128xf32> to vector<16x128xf32>
    %113 = arith.addf %108, %112 : vector<16x128xf32>
    %114 = arith.addf %0, %113 : vector<16x128xf32>
    %c0_39 = arith.constant 0 : index
    %c0_40 = arith.constant 0 : index
    %115 = vector.load %arg7[%c0_39, %c0_40] : memref<1x128xf32, #tpu.memory_space<vmem>>, vector<1x128xf32>
    %116 = vector.shape_cast %115 : vector<1x128xf32> to vector<128xf32>
    %c0_41 = arith.constant 0 : index
    %c0_42 = arith.constant 0 : index
    %117 = vector.load %arg8[%c0_41, %c0_42] : memref<1x128xf32, #tpu.memory_space<vmem>>, vector<1x128xf32>
    %118 = vector.shape_cast %117 : vector<1x128xf32> to vector<128xf32>
    %cst_43 = arith.constant dense<0.000000e+00> : vector<16xf32>
    %119 = vector.multi_reduction <add>, %114, %cst_43 [1] : vector<16x128xf32> to vector<16xf32>
    %120 = vector.shape_cast %119 : vector<16xf32> to vector<16x1xf32>
    %cst_44 = arith.constant 1.280000e+02 : f32
    %121 = vector.broadcast %cst_44 : f32 to vector<16x1xf32>
    %122 = arith.divf %120, %121 : vector<16x1xf32>
    %123 = vector.broadcast %122 : vector<16x1xf32> to vector<16x128xf32>
    %124 = arith.subf %114, %123 : vector<16x128xf32>
    %125 = arith.mulf %124, %124 : vector<16x128xf32>
    %cst_45 = arith.constant dense<0.000000e+00> : vector<16xf32>
    %126 = vector.multi_reduction <add>, %125, %cst_45 [1] : vector<16x128xf32> to vector<16xf32>
    %127 = vector.shape_cast %126 : vector<16xf32> to vector<16x1xf32>
    %cst_46 = arith.constant 1.280000e+02 : f32
    %128 = vector.broadcast %cst_46 : f32 to vector<16x1xf32>
    %129 = arith.divf %127, %128 : vector<16x1xf32>
    %130 = vector.broadcast %122 : vector<16x1xf32> to vector<16x128xf32>
    %131 = arith.subf %114, %130 : vector<16x128xf32>
    %cst_47 = arith.constant 9.99999996E-13 : f32
    %132 = vector.broadcast %cst_47 : f32 to vector<16x1xf32>
    %133 = arith.addf %129, %132 : vector<16x1xf32>
    %134 = math.rsqrt %133 : vector<16x1xf32>
    %135 = vector.broadcast %134 : vector<16x1xf32> to vector<16x128xf32>
    %136 = arith.mulf %131, %135 : vector<16x128xf32>
    %137 = vector.shape_cast %116 : vector<128xf32> to vector<1x128xf32>
    %138 = vector.broadcast %137 : vector<1x128xf32> to vector<16x128xf32>
    %139 = arith.mulf %136, %138 : vector<16x128xf32>
    %140 = vector.shape_cast %118 : vector<128xf32> to vector<1x128xf32>
    %141 = vector.broadcast %140 : vector<1x128xf32> to vector<16x128xf32>
    %142 = arith.addf %139, %141 : vector<16x128xf32>
    %143 = arith.truncf %142 : vector<16x128xf32> to vector<16x128xbf16>
    %c0_48 = arith.constant 0 : index
    %c0_49 = arith.constant 0 : index
    %144 = vector.load %arg9[%c0_48, %c0_49] : memref<128x256xbf16, #tpu.memory_space<vmem>>, vector<128x256xbf16>
    %cst_50 = arith.constant dense<0.000000e+00> : vector<16x256xf32>
    %145 = tpu.matmul %143, %144, %cst_50 {dimension_numbers = #tpu.dot_dimension_numbers<[1], [0], [0], [1], [0, 0, 1, 1], [], []>} : vector<16x128xbf16>, vector<128x256xbf16>, vector<16x256xf32> -> vector<16x256xf32>
    %c0_51 = arith.constant 0 : index
    %c0_52 = arith.constant 0 : index
    %146 = vector.load %arg10[%c0_51, %c0_52] : memref<1x256xf32, #tpu.memory_space<vmem>>, vector<1x256xf32>
    %147 = vector.shape_cast %146 : vector<1x256xf32> to vector<256xf32>
    %148 = vector.shape_cast %147 : vector<256xf32> to vector<1x256xf32>
    %149 = vector.broadcast %148 : vector<1x256xf32> to vector<16x256xf32>
    %150 = arith.addf %145, %149 : vector<16x256xf32>
    %cst_53 = arith.constant 5.000000e-01 : f32
    %151 = vector.broadcast %cst_53 : f32 to vector<16x256xf32>
    %152 = arith.mulf %151, %150 : vector<16x256xf32>
    %cst_54 = arith.constant 4.471500e-02 : f32
    %153 = vector.broadcast %cst_54 : f32 to vector<16x256xf32>
    %154 = arith.mulf %153, %150 : vector<16x256xf32>
    %155 = arith.mulf %154, %150 : vector<16x256xf32>
    %156 = arith.mulf %155, %150 : vector<16x256xf32>
    %157 = arith.addf %150, %156 : vector<16x256xf32>
    %cst_55 = arith.constant 0.797884583 : f32
    %158 = vector.broadcast %cst_55 : f32 to vector<16x256xf32>
    %159 = arith.mulf %158, %157 : vector<16x256xf32>
    %160 = math.tanh %159 : vector<16x256xf32>
    %cst_56 = arith.constant 1.000000e+00 : f32
    %161 = vector.broadcast %cst_56 : f32 to vector<16x256xf32>
    %162 = arith.addf %161, %160 : vector<16x256xf32>
    %163 = arith.mulf %152, %162 : vector<16x256xf32>
    %164 = arith.truncf %163 : vector<16x256xf32> to vector<16x256xbf16>
    %c0_57 = arith.constant 0 : index
    %c0_58 = arith.constant 0 : index
    %165 = vector.load %arg11[%c0_57, %c0_58] : memref<256x128xbf16, #tpu.memory_space<vmem>>, vector<256x128xbf16>
    %cst_59 = arith.constant dense<0.000000e+00> : vector<16x128xf32>
    %166 = tpu.matmul %164, %165, %cst_59 {dimension_numbers = #tpu.dot_dimension_numbers<[1], [0], [0], [1], [0, 0, 1, 1], [], []>} : vector<16x256xbf16>, vector<256x128xbf16>, vector<16x128xf32> -> vector<16x128xf32>
    %c0_60 = arith.constant 0 : index
    %c0_61 = arith.constant 0 : index
    %167 = vector.load %arg12[%c0_60, %c0_61] : memref<1x128xf32, #tpu.memory_space<vmem>>, vector<1x128xf32>
    %168 = vector.shape_cast %167 : vector<1x128xf32> to vector<128xf32>
    %169 = vector.shape_cast %168 : vector<128xf32> to vector<1x128xf32>
    %170 = vector.broadcast %169 : vector<1x128xf32> to vector<16x128xf32>
    %171 = arith.addf %166, %170 : vector<16x128xf32>
    %172 = arith.addf %171, %142 : vector<16x128xf32>
    %c0_62 = arith.constant 0 : index
    %c0_63 = arith.constant 0 : index
    %173 = vector.load %arg13[%c0_62, %c0_63] : memref<1x128xf32, #tpu.memory_space<vmem>>, vector<1x128xf32>
    %174 = vector.shape_cast %173 : vector<1x128xf32> to vector<128xf32>
    %c0_64 = arith.constant 0 : index
    %c0_65 = arith.constant 0 : index
    %175 = vector.load %arg14[%c0_64, %c0_65] : memref<1x128xf32, #tpu.memory_space<vmem>>, vector<1x128xf32>
    %176 = vector.shape_cast %175 : vector<1x128xf32> to vector<128xf32>
    %cst_66 = arith.constant dense<0.000000e+00> : vector<16xf32>
    %177 = vector.multi_reduction <add>, %172, %cst_66 [1] : vector<16x128xf32> to vector<16xf32>
    %178 = vector.shape_cast %177 : vector<16xf32> to vector<16x1xf32>
    %cst_67 = arith.constant 1.280000e+02 : f32
    %179 = vector.broadcast %cst_67 : f32 to vector<16x1xf32>
    %180 = arith.divf %178, %179 : vector<16x1xf32>
    %181 = vector.broadcast %180 : vector<16x1xf32> to vector<16x128xf32>
    %182 = arith.subf %172, %181 : vector<16x128xf32>
    %183 = arith.mulf %182, %182 : vector<16x128xf32>
    %cst_68 = arith.constant dense<0.000000e+00> : vector<16xf32>
    %184 = vector.multi_reduction <add>, %183, %cst_68 [1] : vector<16x128xf32> to vector<16xf32>
    %185 = vector.shape_cast %184 : vector<16xf32> to vector<16x1xf32>
    %cst_69 = arith.constant 1.280000e+02 : f32
    %186 = vector.broadcast %cst_69 : f32 to vector<16x1xf32>
    %187 = arith.divf %185, %186 : vector<16x1xf32>
    %188 = vector.broadcast %180 : vector<16x1xf32> to vector<16x128xf32>
    %189 = arith.subf %172, %188 : vector<16x128xf32>
    %cst_70 = arith.constant 9.99999996E-13 : f32
    %190 = vector.broadcast %cst_70 : f32 to vector<16x1xf32>
    %191 = arith.addf %187, %190 : vector<16x1xf32>
    %192 = math.rsqrt %191 : vector<16x1xf32>
    %193 = vector.broadcast %192 : vector<16x1xf32> to vector<16x128xf32>
    %194 = arith.mulf %189, %193 : vector<16x128xf32>
    %195 = vector.shape_cast %174 : vector<128xf32> to vector<1x128xf32>
    %196 = vector.broadcast %195 : vector<1x128xf32> to vector<16x128xf32>
    %197 = arith.mulf %194, %196 : vector<16x128xf32>
    %198 = vector.shape_cast %176 : vector<128xf32> to vector<1x128xf32>
    %199 = vector.broadcast %198 : vector<1x128xf32> to vector<16x128xf32>
    %200 = arith.addf %197, %199 : vector<16x128xf32>
    %201 = vector.extract_strided_slice %200 {offsets = [0, 0], sizes = [1, 128], strides = [1, 1]} : vector<16x128xf32> to vector<1x128xf32>
    %202 = vector.extract_strided_slice %200 {offsets = [8, 0], sizes = [1, 128], strides = [1, 1]} : vector<16x128xf32> to vector<1x128xf32>
    %203 = tpu.concatenate %201, %202 in 0 : vector<1x128xf32>, vector<1x128xf32> -> vector<2x128xf32>
    %204 = arith.truncf %203 : vector<2x128xf32> to vector<2x128xbf16>
    %c0_71 = arith.constant 0 : index
    %c0_72 = arith.constant 0 : index
    %205 = vector.load %arg15[%c0_71, %c0_72] : memref<128x128xbf16, #tpu.memory_space<vmem>>, vector<128x128xbf16>
    %cst_73 = arith.constant dense<0.000000e+00> : vector<2x128xf32>
    %206 = tpu.matmul %204, %205, %cst_73 {dimension_numbers = #tpu.dot_dimension_numbers<[1], [0], [0], [1], [0, 0, 1, 1], [], []>} : vector<2x128xbf16>, vector<128x128xbf16>, vector<2x128xf32> -> vector<2x128xf32>
    %c0_74 = arith.constant 0 : index
    %c0_75 = arith.constant 0 : index
    %207 = vector.load %arg16[%c0_74, %c0_75] : memref<1x128xf32, #tpu.memory_space<vmem>>, vector<1x128xf32>
    %208 = vector.shape_cast %207 : vector<1x128xf32> to vector<128xf32>
    %209 = vector.shape_cast %208 : vector<128xf32> to vector<1x128xf32>
    %210 = vector.broadcast %209 : vector<1x128xf32> to vector<2x128xf32>
    %211 = arith.addf %206, %210 : vector<2x128xf32>
    %212 = math.tanh %211 : vector<2x128xf32>
    %c0_76 = arith.constant 0 : index
    %c0_77 = arith.constant 0 : index
    %213 = vector.load %arg17[%c0_76, %c0_77] : memref<2x128xf32, #tpu.memory_space<vmem>>, vector<2x128xf32>
    tpu.vector_store %arg17[%c0_76, %c0_77], %212 {strides = array<i32>} : memref<2x128xf32, #tpu.memory_space<vmem>>, vector<2x128xf32>,
    return
  }
  func.func @transform_0(%arg0: i32) -> (i32, i32) {
    %c0_i32 = arith.constant 0 : i32
    %c0_i32_0 = arith.constant 0 : i32
    %c0_i32_1 = arith.constant 0 : i32
    return %c0_i32, %c0_i32_0 : i32, i32
  }
  func.func @transform_1(%arg0: i32) -> (i32, i32) {
    %c0_i32 = arith.constant 0 : i32
    %c0_i32_0 = arith.constant 0 : i32
    %c0_i32_1 = arith.constant 0 : i32
    return %c0_i32, %c0_i32_0 : i32, i32
  }
  func.func @transform_2(%arg0: i32) -> (i32, i32) {
    %c0_i32 = arith.constant 0 : i32
    %c0_i32_0 = arith.constant 0 : i32
    %c0_i32_1 = arith.constant 0 : i32
    return %c0_i32, %c0_i32_0 : i32, i32
  }
  func.func @transform_3(%arg0: i32) -> (i32, i32) {
    %c0_i32 = arith.constant 0 : i32
    %c0_i32_0 = arith.constant 0 : i32
    %c0_i32_1 = arith.constant 0 : i32
    return %c0_i32, %c0_i32_0 : i32, i32
  }
  func.func @transform_4(%arg0: i32) -> (i32, i32) {
    %c0_i32 = arith.constant 0 : i32
    %c0_i32_0 = arith.constant 0 : i32
    %c0_i32_1 = arith.constant 0 : i32
    return %c0_i32, %c0_i32_0 : i32, i32
  }
  func.func @transform_5(%arg0: i32) -> (i32, i32) {
    %c0_i32 = arith.constant 0 : i32
    %c0_i32_0 = arith.constant 0 : i32
    %c0_i32_1 = arith.constant 0 : i32
    return %c0_i32, %c0_i32_0 : i32, i32
  }
  func.func @transform_6(%arg0: i32) -> (i32, i32) {
    %c0_i32 = arith.constant 0 : i32
    %c0_i32_0 = arith.constant 0 : i32
    %c0_i32_1 = arith.constant 0 : i32
    return %c0_i32, %c0_i32_0 : i32, i32
  }
  func.func @transform_7(%arg0: i32) -> (i32, i32) {
    %c0_i32 = arith.constant 0 : i32
    %c0_i32_0 = arith.constant 0 : i32
    %c0_i32_1 = arith.constant 0 : i32
    return %c0_i32, %c0_i32_0 : i32, i32
  }
  func.func @transform_8(%arg0: i32) -> (i32, i32) {
    %c0_i32 = arith.constant 0 : i32
    %c0_i32_0 = arith.constant 0 : i32
    %c0_i32_1 = arith.constant 0 : i32
    return %c0_i32, %c0_i32_0 : i32, i32
  }
  func.func @transform_9(%arg0: i32) -> (i32, i32) {
    %c0_i32 = arith.constant 0 : i32
    %c0_i32_0 = arith.constant 0 : i32
    %c0_i32_1 = arith.constant 0 : i32
    return %c0_i32, %c0_i32_0 : i32, i32
  }
  func.func @transform_10(%arg0: i32) -> (i32, i32) {
    %c0_i32 = arith.constant 0 : i32
    %c0_i32_0 = arith.constant 0 : i32
    %c0_i32_1 = arith.constant 0 : i32
    return %c0_i32, %c0_i32_0 : i32, i32
  }
  func.func @transform_11(%arg0: i32) -> (i32, i32) {
    %c0_i32 = arith.constant 0 : i32
    %c0_i32_0 = arith.constant 0 : i32
    %c0_i32_1 = arith.constant 0 : i32
    return %c0_i32, %c0_i32_0 : i32, i32
  }
  func.func @transform_12(%arg0: i32) -> (i32, i32) {
    %c0_i32 = arith.constant 0 : i32
    %c0_i32_0 = arith.constant 0 : i32
    %c0_i32_1 = arith.constant 0 : i32
    return %c0_i32, %c0_i32_0 : i32, i32
  }
  func.func @transform_13(%arg0: i32) -> (i32, i32) {
    %c0_i32 = arith.constant 0 : i32
    %c0_i32_0 = arith.constant 0 : i32
    %c0_i32_1 = arith.constant 0 : i32
    return %c0_i32, %c0_i32_0 : i32, i32
  }
  func.func @transform_14(%arg0: i32) -> (i32, i32) {
    %c0_i32 = arith.constant 0 : i32
    %c0_i32_0 = arith.constant 0 : i32
    %c0_i32_1 = arith.constant 0 : i32
    return %c0_i32, %c0_i32_0 : i32, i32
  }
  func.func @transform_15(%arg0: i32) -> (i32, i32) {
    %c0_i32 = arith.constant 0 : i32
    %c0_i32_0 = arith.constant 0 : i32
    %c0_i32_1 = arith.constant 0 : i32
    return %c0_i32, %c0_i32_0 : i32, i32
  }
  func.func @transform_16(%arg0: i32) -> (i32, i32) {
    %c0_i32 = arith.constant 0 : i32
    %c0_i32_0 = arith.constant 0 : i32
    %c0_i32_1 = arith.constant 0 : i32
    return %c0_i32, %c0_i32_0 : i32, i32
  }
}

</mosaic_0001>

<llo_original>
// kernel: tpu_custom_call.1
$region0: #{tpu_custom_call.1}
  #allocation0 [shape = 'u32[]', space=smem, size = 0x4, offset = 0x4, fixed_abs, tag = 'smem constant byte address 0x4 - core index']
  #allocation1 [shape = 'u32[144,128]{1,0:T(1,128)}', space=vmem, size = 0x12000, scoped, tag = 'internal scratch']
  #allocation2 [shape = 'f32[16,128]{1,0:T(8,128)}', space=vmem, size = 0x2000, scoped, tag = 'scratch operand']
  %s0 = inlined_call_operand.hbm [shape: f32[16,128], index: 0, kind: input, shape index: {}]
  %s1 = inlined_call_operand.hbm [shape: f32[16,16], index: 1, kind: input, shape index: {}]
  %s2 = inlined_call_operand.hbm [shape: bf16[128,384], index: 2, kind: input, shape index: {}]
  %s3 = inlined_call_operand.vmem [shape: f32[1,384], index: 3, kind: input, shape index: {}]
  %s4 = inlined_call_operand.hbm [shape: bf16[128,128], index: 4, kind: input, shape index: {}]
  %s5 = inlined_call_operand.vmem [shape: f32[1,128], index: 5, kind: input, shape index: {}]
  %s6 = inlined_call_operand.vmem [shape: f32[1,128], index: 6, kind: input, shape index: {}]
  %s7 = inlined_call_operand.vmem [shape: f32[1,128], index: 7, kind: input, shape index: {}]
  %s8 = inlined_call_operand.hbm [shape: bf16[128,256], index: 8, kind: input, shape index: {}]
  %s9 = inlined_call_operand.vmem [shape: f32[1,256], index: 9, kind: input, shape index: {}]
  %s10 = inlined_call_operand.hbm [shape: bf16[256,128], index: 10, kind: input, shape index: {}]
  %s11 = inlined_call_operand.vmem [shape: f32[1,128], index: 11, kind: input, shape index: {}]
  %s12 = inlined_call_operand.vmem [shape: f32[1,128], index: 12, kind: input, shape index: {}]
  %s13 = inlined_call_operand.vmem [shape: f32[1,128], index: 13, kind: input, shape index: {}]
  %s14 = inlined_call_operand.hbm [shape: bf16[128,128], index: 14, kind: input, shape index: {}]
  %s15 = inlined_call_operand.vmem [shape: f32[1,128], index: 15, kind: input, shape index: {}]
  %s16 = inlined_call_operand.hbm [shape: f32[2,128], index: 16, kind: output, shape index: {}]
  %s17 = sld [smem:[#allocation0]]
  $region102: #{tpu_custom_call.1} parent=0
    _
  %s19 = ssub.s32 1, %s17
  %s20 = scalar_select 0, %s19, %s17
  $region1: #{tpu_custom_call.1} parent=0
    #allocation3 [shape = 'u8[8192]{0}', space=vmem, size = 0x2000, scoped, tag = 'input window, operand 0, single buffered']
    #allocation4 [shape = 's32[1]{0}', space=sflag, size = 0x4, scoped, tag = 'scoped memory for tpu_custom_call.1']
    #allocation5 [shape = 's32[1]{0}', space=sflag, size = 0x4, scoped, tag = 'scoped memory for tpu_custom_call.1']
    #allocation6 [shape = 'u8[8192]{0}', space=vmem, size = 0x2000, scoped, tag = 'input window, operand 1, single buffered']
    #allocation7 [shape = 's32[1]{0}', space=sflag, size = 0x4, scoped, tag = 'scoped memory for tpu_custom_call.1']
    #allocation8 [shape = 'u8[98304]{0}', space=vmem, size = 0x18000, scoped, tag = 'input window, operand 2, single buffered']
    #allocation9 [shape = 'u8[32768]{0}', space=vmem, size = 0x8000, scoped, tag = 'input window, operand 4, single buffered']
    #allocation10 [shape = 's32[1]{0}', space=sflag, size = 0x4, scoped, tag = 'scoped memory for tpu_custom_call.1']
    #allocation11 [shape = 'u8[65536]{0}', space=vmem, size = 0x10000, scoped, tag = 'input window, operand 8, single buffered']
    #allocation12 [shape = 'u8[65536]{0}', space=vmem, size = 0x10000, scoped, tag = 'input window, operand 10, single buffered']
    #allocation13 [shape = 's32[1]{0}', space=sflag, size = 0x4, scoped, tag = 'scoped memory for tpu_custom_call.1']
    #allocation14 [shape = 'u8[32768]{0}', space=vmem, size = 0x8000, scoped, tag = 'input window, operand 14, single buffered']
    #allocation15 [shape = 'u8[1024]{0}', space=vmem, size = 0x400, scoped, tag = 'output window, operand 0, single buffered']
    %21 = vsyncpa [#allocation4], 0
    %22 = vsyncpa [#allocation7], 0
    %23 = vsyncpa [#allocation10], 0
    %24 = vsyncpa [#allocation13], 0
    %25 = vsyncpa [#allocation5], 0
    // Predicated region
    $region2: #{tpu_custom_call.1} parent=1 // pred_check
      _
    $region3: #{tpu_custom_call.1} parent=1 // pred_check_branch
      %27 = sbr.rel (0) target = $region5
    $region4: #{tpu_custom_call.1} parent=1 // pred_region
      %s29 = ssub.s32 256, 256
      %30 = vsyncadd [#allocation4], %s29
      %s31 = sshll.u32 [#allocation3], 4
      %s32 = int_to_ptr.vmem [resolvable:$true] %s31
      %37 = dma.hbm_to_vmem [thread:$0]  %s0, 256, %s32, [#allocation4], 128, 128, 8
    $region5: #{tpu_custom_call.1} parent=1 // pred_fallthru
      _
    // Predicated region
    $region6: #{tpu_custom_call.1} parent=1 // pred_check
      _
    $region7: #{tpu_custom_call.1} parent=1 // pred_check_branch
      %39 = sbr.rel (0) target = $region9
    $region8: #{tpu_custom_call.1} parent=1 // pred_region
      %s41 = ssub.s32 256, 256
      %42 = vsyncadd [#allocation7], %s41
      %s43 = sshll.u32 [#allocation6], 4
      %s44 = int_to_ptr.vmem [resolvable:$true] %s43
      %49 = dma.hbm_to_vmem [thread:$0]  %s1, 256, %s44, [#allocation7], 128, 128, 8
    $region9: #{tpu_custom_call.1} parent=1 // pred_fallthru
      _
    // Predicated region
    $region10: #{tpu_custom_call.1} parent=1 // pred_check
      _
    $region11: #{tpu_custom_call.1} parent=1 // pred_check_branch
      %51 = sbr.rel (0) target = $region13
    $region12: #{tpu_custom_call.1} parent=1 // pred_region
      %s53 = ssub.s32 3072, 3072
      %54 = vsyncadd [#allocation7], %s53
      %s55 = sshll.u32 [#allocation8], 4
      %s56 = int_to_ptr.vmem [resolvable:$true] %s55
      %61 = dma.hbm_to_vmem [thread:$0]  %s2, 3072, %s56, [#allocation7], 192, 192, 12
    $region13: #{tpu_custom_call.1} parent=1 // pred_fallthru
      _
    // Predicated region
    $region14: #{tpu_custom_call.1} parent=1 // pred_check
      _
    $region15: #{tpu_custom_call.1} parent=1 // pred_check_branch
      %63 = sbr.rel (0) target = $region17
    $region16: #{tpu_custom_call.1} parent=1 // pred_region
      _
    $region17: #{tpu_custom_call.1} parent=1 // pred_fallthru
      _
    // Predicated region
    $region18: #{tpu_custom_call.1} parent=1 // pred_check
      _
    $region19: #{tpu_custom_call.1} parent=1 // pred_check_branch
      %65 = sbr.rel (0) target = $region21
    $region20: #{tpu_custom_call.1} parent=1 // pred_region
      %s67 = ssub.s32 1024, 1024
      %68 = vsyncadd [#allocation10], %s67
      %s69 = sshll.u32 [#allocation9], 4
      %s70 = int_to_ptr.vmem [resolvable:$true] %s69
      %75 = dma.hbm_to_vmem [thread:$0]  %s4, 1024, %s70, [#allocation10], 64, 64, 4
    $region21: #{tpu_custom_call.1} parent=1 // pred_fallthru
      _
    // Predicated region
    $region22: #{tpu_custom_call.1} parent=1 // pred_check
      _
    $region23: #{tpu_custom_call.1} parent=1 // pred_check_branch
      %77 = sbr.rel (0) target = $region25
    $region24: #{tpu_custom_call.1} parent=1 // pred_region
      _
    $region25: #{tpu_custom_call.1} parent=1 // pred_fallthru
      _
    // Predicated region
    $region26: #{tpu_custom_call.1} parent=1 // pred_check
      _
    $region27: #{tpu_custom_call.1} parent=1 // pred_check_branch
      %79 = sbr.rel (0) target = $region29
    $region28: #{tpu_custom_call.1} parent=1 // pred_region
      _
    $region29: #{tpu_custom_call.1} parent=1 // pred_fallthru
      _
    // Predicated region
    $region30: #{tpu_custom_call.1} parent=1 // pred_check
      _
    $region31: #{tpu_custom_call.1} parent=1 // pred_check_branch
      %81 = sbr.rel (0) target = $region33
    $region32: #{tpu_custom_call.1} parent=1 // pred_region
      _
    $region33: #{tpu_custom_call.1} parent=1 // pred_fallthru
      _
    // Predicated region
    $region34: #{tpu_custom_call.1} parent=1 // pred_check
      _
    $region35: #{tpu_custom_call.1} parent=1 // pred_check_branch
      %83 = sbr.rel (0) target = $region37
    $region36: #{tpu_custom_call.1} parent=1 // pred_region
      %s85 = ssub.s32 2048, 2048
      %86 = vsyncadd [#allocation10], %s85
      %s87 = sshll.u32 [#allocation11], 4
      %s88 = int_to_ptr.vmem [resolvable:$true] %s87
      %93 = dma.hbm_to_vmem [thread:$0]  %s8, 2048, %s88, [#allocation10], 128, 128, 8
    $region37: #{tpu_custom_call.1} parent=1 // pred_fallthru
      _
    // Predicated region
    $region38: #{tpu_custom_call.1} parent=1 // pred_check
      _
    $region39: #{tpu_custom_call.1} parent=1 // pred_check_branch
      %95 = sbr.rel (0) target = $region41
    $region40: #{tpu_custom_call.1} parent=1 // pred_region
      _
    $region41: #{tpu_custom_call.1} parent=1 // pred_fallthru
      _
    // Predicated region
    $region42: #{tpu_custom_call.1} parent=1 // pred_check
      _
    $region43: #{tpu_custom_call.1} parent=1 // pred_check_branch
      %97 = sbr.rel (0) target = $region45
    $region44: #{tpu_custom_call.1} parent=1 // pred_region
      %s99 = ssub.s32 2048, 2048
      %100 = vsyncadd [#allocation13], %s99
      %s101 = sshll.u32 [#allocation12], 4
      %s102 = int_to_ptr.vmem [resolvable:$true] %s101
      %107 = dma.hbm_to_vmem [thread:$0]  %s10, 2048, %s102, [#allocation13], 64, 64, 4
    $region45: #{tpu_custom_call.1} parent=1 // pred_fallthru
      _
    // Predicated region
    $region46: #{tpu_custom_call.1} parent=1 // pred_check
      _
    $region47: #{tpu_custom_call.1} parent=1 // pred_check_branch
      %109 = sbr.rel (0) target = $region49
    $region48: #{tpu_custom_call.1} parent=1 // pred_region
      _
    $region49: #{tpu_custom_call.1} parent=1 // pred_fallthru
      _
    // Predicated region
    $region50: #{tpu_custom_call.1} parent=1 // pred_check
      _
    $region51: #{tpu_custom_call.1} parent=1 // pred_check_branch
      %111 = sbr.rel (0) target = $region53
    $region52: #{tpu_custom_call.1} parent=1 // pred_region
      _
    $region53: #{tpu_custom_call.1} parent=1 // pred_fallthru
      _
    // Predicated region
    $region54: #{tpu_custom_call.1} parent=1 // pred_check
      _
    $region55: #{tpu_custom_call.1} parent=1 // pred_check_branch
      %113 = sbr.rel (0) target = $region57
    $region56: #{tpu_custom_call.1} parent=1 // pred_region
      _
    $region57: #{tpu_custom_call.1} parent=1 // pred_fallthru
      _
    // Predicated region
    $region58: #{tpu_custom_call.1} parent=1 // pred_check
      _
    $region59: #{tpu_custom_call.1} parent=1 // pred_check_branch
      %115 = sbr.rel (0) target = $region61
    $region60: #{tpu_custom_call.1} parent=1 // pred_region
      %s117 = ssub.s32 1024, 1024
      %118 = vsyncadd [#allocation13], %s117
      %s119 = sshll.u32 [#allocation14], 4
      %s120 = int_to_ptr.vmem [resolvable:$true] %s119
      %125 = dma.hbm_to_vmem [thread:$0]  %s14, 1024, %s120, [#allocation13], 64, 64, 4
    $region61: #{tpu_custom_call.1} parent=1 // pred_fallthru
      _
    // Predicated region
    $region62: #{tpu_custom_call.1} parent=1 // pred_check
      _
    $region63: #{tpu_custom_call.1} parent=1 // pred_check_branch
      %127 = sbr.rel (0) target = $region65
    $region64: #{tpu_custom_call.1} parent=1 // pred_region
      _
    $region65: #{tpu_custom_call.1} parent=1 // pred_fallthru
      _
    // Predicated region
    $region66: #{tpu_custom_call.1} parent=1 // pred_check
      _
    $region67: #{tpu_custom_call.1} parent=1 // pred_check_branch
      %129 = sbr.rel (0) target = $region69
    $region68: #{tpu_custom_call.1} parent=1 // pred_region
      %130 = dma.done [#allocation4], 256
    $region69: #{tpu_custom_call.1} parent=1 // pred_fallthru
      _
    // Predicated region
    $region70: #{tpu_custom_call.1} parent=1 // pred_check
      _
    $region71: #{tpu_custom_call.1} parent=1 // pred_check_branch
      %132 = sbr.rel (0) target = $region73
    $region72: #{tpu_custom_call.1} parent=1 // pred_region
      %133 = dma.done [#allocation7], 256
    $region73: #{tpu_custom_call.1} parent=1 // pred_fallthru
      _
    // Predicated region
    $region74: #{tpu_custom_call.1} parent=1 // pred_check
      _
    $region75: #{tpu_custom_call.1} parent=1 // pred_check_branch
      %135 = sbr.rel (0) target = $region77
    $region76: #{tpu_custom_call.1} parent=1 // pred_region
      %136 = dma.done [#allocation7], 3072
    $region77: #{tpu_custom_call.1} parent=1 // pred_fallthru
      _
    // Predicated region
    $region78: #{tpu_custom_call.1} parent=1 // pred_check
      _
    $region79: #{tpu_custom_call.1} parent=1 // pred_check_branch
      %138 = sbr.rel (0) target = $region81
    $region80: #{tpu_custom_call.1} parent=1 // pred_region
      %139 = dma.done [#allocation10], 1024
    $region81: #{tpu_custom_call.1} parent=1 // pred_fallthru
      _
    // Predicated region
    $region82: #{tpu_custom_call.1} parent=1 // pred_check
      _
    $region83: #{tpu_custom_call.1} parent=1 // pred_check_branch
      %141 = sbr.rel (0) target = $region85
    $region84: #{tpu_custom_call.1} parent=1 // pred_region
      %142 = dma.done [#allocation10], 2048
    $region85: #{tpu_custom_call.1} parent=1 // pred_fallthru
      _
    // Predicated region
    $region86: #{tpu_custom_call.1} parent=1 // pred_check
      _
    $region87: #{tpu_custom_call.1} parent=1 // pred_check_branch
      %144 = sbr.rel (0) target = $region89
    $region88: #{tpu_custom_call.1} parent=1 // pred_region
      %145 = dma.done [#allocation13], 2048
    $region89: #{tpu_custom_call.1} parent=1 // pred_fallthru
      _
    // Predicated region
    $region90: #{tpu_custom_call.1} parent=1 // pred_check
      _
    $region91: #{tpu_custom_call.1} parent=1 // pred_check_branch
      %147 = sbr.rel (0) target = $region93
    $region92: #{tpu_custom_call.1} parent=1 // pred_region
      %148 = dma.done [#allocation13], 1024
    $region93: #{tpu_custom_call.1} parent=1 // pred_fallthru
      _
    %v150 = vld [vmem:[#allocation3] sm:$0xff]
    %v151 = vld [vmem:[#allocation3 + $0x8] sm:$0xff]
    %v152 = vld [vmem:[#allocation6] sm:$0xff]
    %v153 = vld [vmem:[#allocation6 + $0x8] sm:$0xff]
    %v154 = vpack.c.bf16 %v151, %v150
    %v155 = vld [vmem:[#allocation8] sm:$0xff]
    %v156 = vld [vmem:[#allocation8 + $0x8] sm:$0xf]
    %v157 = vld [vmem:[#allocation8 + $0xc] sm:$0xff]
    %v158 = vld [vmem:[#allocation8 + $0x14] sm:$0xf]
    %v159 = vld [vmem:[#allocation8 + $0x18] sm:$0xff]
    %v160 = vld [vmem:[#allocation8 + $0x20] sm:$0xf]
    %v161 = vld [vmem:[#allocation8 + $0x24] sm:$0xff]
    %v162 = vld [vmem:[#allocation8 + $0x2c] sm:$0xf]
    %v163 = vld [vmem:[#allocation8 + $0x30] sm:$0xff]
    %v164 = vld [vmem:[#allocation8 + $0x38] sm:$0xf]
    %v165 = vld [vmem:[#allocation8 + $0x3c] sm:$0xff]
    %v166 = vld [vmem:[#allocation8 + $0x44] sm:$0xf]
    %v167 = vld [vmem:[#allocation8 + $0x48] sm:$0xff]
    %v168 = vld [vmem:[#allocation8 + $0x50] sm:$0xf]
    %v169 = vld [vmem:[#allocation8 + $0x54] sm:$0xff]
    %v170 = vld [vmem:[#allocation8 + $0x5c] sm:$0xf]
    %v171 = vld [vmem:[#allocation8 + $0x60] sm:$0xff]
    %v172 = vld [vmem:[#allocation8 + $0x68] sm:$0xf]
    %v173 = vld [vmem:[#allocation8 + $0x6c] sm:$0xff]
    %v174 = vld [vmem:[#allocation8 + $0x74] sm:$0xf]
    %v175 = vld [vmem:[#allocation8 + $0x78] sm:$0xff]
    %v176 = vld [vmem:[#allocation8 + $0x80] sm:$0xf]
    %v177 = vld [vmem:[#allocation8 + $0x84] sm:$0xff]
    %v178 = vld [vmem:[#allocation8 + $0x8c] sm:$0xf]
    %v179 = vld [vmem:[#allocation8 + $0x90] sm:$0xff]
    %v180 = vld [vmem:[#allocation8 + $0x98] sm:$0xf]
    %v181 = vld [vmem:[#allocation8 + $0x9c] sm:$0xff]
    %v182 = vld [vmem:[#allocation8 + $0xa4] sm:$0xf]
    %v183 = vld [vmem:[#allocation8 + $0xa8] sm:$0xff]
    %v184 = vld [vmem:[#allocation8 + $0xb0] sm:$0xf]
    %v185 = vld [vmem:[#allocation8 + $0xb4] sm:$0xff]
    %v186 = vld [vmem:[#allocation8 + $0xbc] sm:$0xf]
    %v187 = vld [vmem:[%s3] sm:$0x7]
    %v189 = vlaneseq
    %v190 = vshrl.u32 %v189, 7
    %v191 = vsub.s32 0, %v190
    %v192 = vrot.slane %v187, %v191
    %v193 = vlaneseq
    %v194 = vshrl.u32 %v193, 7
    %v195 = vsub.s32 1, %v194
    %v196 = vrot.slane %v187, %v195
    %v197 = vlaneseq
    %v198 = vshrl.u32 %v197, 7
    %v199 = vsub.s32 2, %v198
    %v200 = vrot.slane %v187, %v199
    %v236 = vunpack.c.l.b16 %v155
    %v237 = vunpack.c.h.b16 %v155
    %v238 = vunpack.c.l.b16 %v156
    %v239 = vunpack.c.l.b16 %v157
    %v240 = vunpack.c.h.b16 %v157
    %v241 = vunpack.c.l.b16 %v158
    %v242 = vunpack.c.l.b16 %v159
    %v243 = vunpack.c.h.b16 %v159
    %v244 = vunpack.c.l.b16 %v160
    %v245 = vunpack.c.l.b16 %v161
    %v246 = vunpack.c.h.b16 %v161
    %v247 = vunpack.c.l.b16 %v162
    %v248 = vunpack.c.l.b16 %v163
    %v249 = vunpack.c.h.b16 %v163
    %v250 = vunpack.c.l.b16 %v164
    %v251 = vunpack.c.l.b16 %v165
    %v252 = vunpack.c.h.b16 %v165
    %v253 = vunpack.c.l.b16 %v166
    %v254 = vunpack.c.l.b16 %v167
    %v255 = vunpack.c.h.b16 %v167
    %v256 = vunpack.c.l.b16 %v168
    %v257 = vunpack.c.l.b16 %v169
    %v258 = vunpack.c.h.b16 %v169
    %v259 = vunpack.c.l.b16 %v170
    %v260 = vunpack.c.l.b16 %v171
    %v261 = vunpack.c.h.b16 %v171
    %v262 = vunpack.c.l.b16 %v172
    %v263 = vunpack.c.l.b16 %v173
    %v264 = vunpack.c.h.b16 %v173
    %v265 = vunpack.c.l.b16 %v174
    %v266 = vunpack.c.l.b16 %v175
    %v267 = vunpack.c.h.b16 %v175
    %v268 = vunpack.c.l.b16 %v176
    %v269 = vunpack.c.l.b16 %v177
    %v270 = vunpack.c.h.b16 %v177
    %v271 = vunpack.c.l.b16 %v178
    %v272 = vunpack.c.l.b16 %v179
    %v273 = vunpack.c.h.b16 %v179
    %v274 = vunpack.c.l.b16 %v180
    %v275 = vunpack.c.l.b16 %v181
    %v276 = vunpack.c.h.b16 %v181
    %v277 = vunpack.c.l.b16 %v182
    %v278 = vunpack.c.l.b16 %v183
    %v279 = vunpack.c.h.b16 %v183
    %v280 = vunpack.c.l.b16 %v184
    %v281 = vunpack.c.l.b16 %v185
    %v282 = vunpack.c.h.b16 %v185
    %v283 = vunpack.c.l.b16 %v186
    %v284 = vpack.c.b16 %v239, %v236
    %v285 = vpack.c.b16 %v240, %v237
    %v286 = vpack.c.b16 %v241, %v238
    %v287 = vpack.c.b16 %v245, %v242
    %v288 = vpack.c.b16 %v246, %v243
    %v289 = vpack.c.b16 %v247, %v244
    %v290 = vpack.c.b16 %v251, %v248
    %v291 = vpack.c.b16 %v252, %v249
    %v292 = vpack.c.b16 %v253, %v250
    %v293 = vpack.c.b16 %v257, %v254
    %v294 = vpack.c.b16 %v258, %v255
    %v295 = vpack.c.b16 %v259, %v256
    %v296 = vpack.c.b16 %v263, %v260
    %v297 = vpack.c.b16 %v264, %v261
    %v298 = vpack.c.b16 %v265, %v262
    %v299 = vpack.c.b16 %v269, %v266
    %v300 = vpack.c.b16 %v270, %v267
    %v301 = vpack.c.b16 %v271, %v268
    %v302 = vpack.c.b16 %v275, %v272
    %v303 = vpack.c.b16 %v276, %v273
    %v304 = vpack.c.b16 %v277, %v274
    %v305 = vpack.c.b16 %v281, %v278
    %v306 = vpack.c.b16 %v282, %v279
    %v307 = vpack.c.b16 %v283, %v280
    %332 = vmatprep.subr.bf16.mxu0 %v285
    %333 = vmatpush1.bf16.msra.mxu0 %v284
    %334 = vmatprep.subr.bf16.mxu0 %v288
    %335 = vmatpush1.bf16.msra.mxu0 %v287
    %336 = vmatprep.subr.bf16.mxu0 %v291
    %337 = vmatpush1.bf16.msra.mxu0 %v290
    %338 = vmatprep.subr.bf16.mxu0 %v294
    %339 = vmatpush1.bf16.msra.mxu0 %v293
    %340 = vmatprep.subr.bf16.mxu0 %v297
    %341 = vmatpush1.bf16.msra.mxu0 %v296
    %342 = vmatprep.subr.bf16.mxu0 %v300
    %343 = vmatpush1.bf16.msra.mxu0 %v299
    %344 = vmatprep.subr.bf16.mxu0 %v303
    %345 = vmatpush1.bf16.msra.mxu0 %v302
    %346 = vmatprep.subr.bf16.mxu0 %v306
    %347 = vmatpush1.bf16.msra.mxu0 %v305
    %348 = vmatprep.subr.bf16.mxu0 0
    %349 = vmatpush1.bf16.msra.mxu0 0
    %350 = vmatprep.subr.bf16.mxu0 0
    %351 = vmatpush1.bf16.msra.mxu0 0
    %352 = vmatprep.subr.bf16.mxu0 0
    %353 = vmatpush1.bf16.msra.mxu0 0
    %354 = vmatprep.subr.bf16.mxu0 0
    %355 = vmatpush1.bf16.msra.mxu0 0
    %356 = vmatprep.subr.bf16.mxu0 0
    %357 = vmatpush1.bf16.msra.mxu0 0
    %358 = vmatprep.subr.bf16.mxu0 0
    %359 = vmatpush1.bf16.msra.mxu0 0
    %360 = vmatprep.subr.bf16.mxu0 0
    %361 = vmatpush1.bf16.msra.mxu0 0
    %362 = vmatprep.subr.bf16.mxu0 0
    %363 = vmatpush1.bf16.msra.mxu0 0
    %364 = vmatprep.mubr.bf16.mxu0 0
    %365 = vmatmul.mubr.bf16.gmra.mrb[0].mxu0 %v154
    %v366 = vpop.f32.mrb[0].mxu0
    %v367 = vadd.f32 %v192, %v366
    %v368 = vpop.f32.mrb[0].mxu0
    %v369 = vadd.f32 %v196, %v368
    %v370 = vpop.f32.mrb[0].mxu0
    %v371 = vadd.f32 %v192, %v370
    %v372 = vpop.f32.mrb[0].mxu0
    %v373 = vadd.f32 %v196, %v372
    %374 = vdwg.mxu0
    %375 = vmatprep.subr.bf16.mxu0 0
    %376 = vmatpush1.bf16.msra.mxu0 %v286
    %377 = vmatprep.subr.bf16.mxu0 0
    %378 = vmatpush1.bf16.msra.mxu0 %v289
    %379 = vmatprep.subr.bf16.mxu0 0
    %380 = vmatpush1.bf16.msra.mxu0 %v292
    %381 = vmatprep.subr.bf16.mxu0 0
    %382 = vmatpush1.bf16.msra.mxu0 %v295
    %383 = vmatprep.subr.bf16.mxu0 0
    %384 = vmatpush1.bf16.msra.mxu0 %v298
    %385 = vmatprep.subr.bf16.mxu0 0
    %386 = vmatpush1.bf16.msra.mxu0 %v301
    %387 = vmatprep.subr.bf16.mxu0 0
    %388 = vmatpush1.bf16.msra.mxu0 %v304
    %389 = vmatprep.subr.bf16.mxu0 0
    %390 = vmatpush1.bf16.msra.mxu0 %v307
    %391 = vmatprep.subr.bf16.mxu0 0
    %392 = vmatpush1.bf16.msra.mxu0 0
    %393 = vmatprep.subr.bf16.mxu0 0
    %394 = vmatpush1.bf16.msra.mxu0 0
    %395 = vmatprep.subr.bf16.mxu0 0
    %396 = vmatpush1.bf16.msra.mxu0 0
    %397 = vmatprep.subr.bf16.mxu0 0
    %398 = vmatpush1.bf16.msra.mxu0 0
    %399 = vmatprep.subr.bf16.mxu0 0
    %400 = vmatpush1.bf16.msra.mxu0 0
    %401 = vmatprep.subr.bf16.mxu0 0
    %402 = vmatpush1.bf16.msra.mxu0 0
    %403 = vmatprep.subr.bf16.mxu0 0
    %404 = vmatpush1.bf16.msra.mxu0 0
    %405 = vmatprep.subr.bf16.mxu0 0
    %406 = vmatpush1.bf16.msra.mxu0 0
    %407 = vmatprep.mubr.bf16.mxu0 0
    %408 = vmatmul.mubr.bf16.gmra.mrb[0].mxu0 %v154
    %v409 = vpop.f32.mrb[0].mxu0
    %v410 = vadd.f32 %v200, %v409
    %v411 = vpop.f32.mrb[0].mxu0
    %v412 = vpop.f32.mrb[0].mxu0
    %v413 = vadd.f32 %v200, %v412
    %v414 = vpop.f32.mrb[0].mxu0
    %415 = vdwg.mxu0
    %v416 = vpack.c.bf16 %v371, %v367
    %v417 = vpack.c.bf16 %v373, %v369
    %v418 = vpack.c.bf16 %v413, %v410
    %vm419 = vcmask 261120
    %v421 = vsel %vm419, %v416, 0
    %v424 = vsel %vm419, %v417, 0
    %426 = vmatprep.subr.bf16.mxu0 0
    %427 = vmatpush1.bf16.xpose.msra.mxu0 %v424
    %428 = vmatprep.subr.bf16.mxu0 0
    %429 = vmatpush1.bf16.xpose.msra.mxu0 0
    %430 = vmatprep.subr.bf16.mxu0 0
    %431 = vmatpush1.bf16.xpose.msra.mxu0 0
    %432 = vmatprep.subr.bf16.mxu0 0
    %433 = vmatpush1.bf16.xpose.msra.mxu0 0
    %434 = vmatprep.subr.bf16.mxu0 0
    %435 = vmatpush1.bf16.xpose.msra.mxu0 0
    %436 = vmatprep.subr.bf16.mxu0 0
    %437 = vmatpush1.bf16.xpose.msra.mxu0 0
    %438 = vmatprep.subr.bf16.mxu0 0
    %439 = vmatpush1.bf16.xpose.msra.mxu0 0
    %440 = vmatprep.subr.bf16.mxu0 0
    %441 = vmatpush1.bf16.xpose.msra.mxu0 0
    %442 = vmatprep.subr.bf16.mxu0 0
    %443 = vmatpush1.bf16.xpose.msra.mxu0 0
    %444 = vmatprep.subr.bf16.mxu0 0
    %445 = vmatpush1.bf16.xpose.msra.mxu0 0
    %446 = vmatprep.subr.bf16.mxu0 0
    %447 = vmatpush1.bf16.xpose.msra.mxu0 0
    %448 = vmatprep.subr.bf16.mxu0 0
    %449 = vmatpush1.bf16.xpose.msra.mxu0 0
    %450 = vmatprep.subr.bf16.mxu0 0
    %451 = vmatpush1.bf16.xpose.msra.mxu0 0
    %452 = vmatprep.subr.bf16.mxu0 0
    %453 = vmatpush1.bf16.xpose.msra.mxu0 0
    %454 = vmatprep.subr.bf16.mxu0 0
    %455 = vmatpush1.bf16.xpose.msra.mxu0 0
    %456 = vmatprep.subr.bf16.mxu0 0
    %457 = vmatpush1.bf16.xpose.msra.mxu0 0
    %458 = vmatprep.mubr.bf16.mxu0 0
    %459 = vmatmul.mubr.bf16.gmra.mrb[0].mxu0 %v421
    %v460 = vpop.f32.mrb[0].mxu0
    %v461 = vadd.f32 0.0, %v460
    %v462 = vpop.f32.mrb[0].mxu0
    %v463 = vpop.f32.mrb[0].mxu0
    %v464 = vadd.f32 0.0, %v463
    %v465 = vpop.f32.mrb[0].mxu0
    %466 = vdwg.mxu0
    %v467 = vmul.f32 %v461, 0.17677669
    %v468 = vmul.f32 %v464, 0.17677669
    %v469 = vadd.f32 %v467, %v152
    %v470 = vadd.f32 %v468, %v153
    %vm471 = vcmask 130048
    %v472 = vsel %vm471, %v469, -inf
    %473 = vmax.xlane.f32.xlu0 %v472
    %v474 = vpop.xlane.xlu0 %473
    %v475 = vsel %vm471, %v470, -inf
    %476 = vmax.xlane.f32.xlu0 %v475
    %v477 = vpop.xlane.xlu0 %476
    %v478 = vsub.f32 %v469, %v474
    %v479 = vsub.f32 %v470, %v477
    %v480 = vmul.f32 %v478, 1.442695
    %v481 = vpow.pop %v480
    %v482 = vmul.f32 %v479, 1.442695
    %v483 = vpow.pop %v482
    %v484 = vsel %vm471, %v481, 0.0
    %485 = vadd.xlane.f32.xlu0 %v484
    %v486 = vpop.xlane.xlu0 %485
    %v487 = vsel %vm471, %v483, 0.0
    %488 = vadd.xlane.f32.xlu0 %v487
    %v489 = vpop.xlane.xlu0 %488
    %v490 = vrcp.pop %v486
    %v491 = vrcp.pop %v489
    %v492 = vmul.f32 %v481, %v490
    %v493 = vmul.f32 %v483, %v491
    %v494 = vpack.c.bf16 %v493, %v492
    %v496 = vsel %vm471, %v494, 0
    %498 = vmatprep.subr.bf16.mxu0 0
    %499 = vmatpush1.bf16.msra.mxu0 %v418
    %500 = vmatprep.subr.bf16.mxu0 0
    %501 = vmatpush1.bf16.msra.mxu0 0
    %502 = vmatprep.subr.bf16.mxu0 0
    %503 = vmatpush1.bf16.msra.mxu0 0
    %504 = vmatprep.subr.bf16.mxu0 0
    %505 = vmatpush1.bf16.msra.mxu0 0
    %506 = vmatprep.subr.bf16.mxu0 0
    %507 = vmatpush1.bf16.msra.mxu0 0
    %508 = vmatprep.subr.bf16.mxu0 0
    %509 = vmatpush1.bf16.msra.mxu0 0
    %510 = vmatprep.subr.bf16.mxu0 0
    %511 = vmatpush1.bf16.msra.mxu0 0
    %512 = vmatprep.subr.bf16.mxu0 0
    %513 = vmatpush1.bf16.msra.mxu0 0
    %514 = vmatprep.subr.bf16.mxu0 0
    %515 = vmatpush1.bf16.msra.mxu0 0
    %516 = vmatprep.subr.bf16.mxu0 0
    %517 = vmatpush1.bf16.msra.mxu0 0
    %518 = vmatprep.subr.bf16.mxu0 0
    %519 = vmatpush1.bf16.msra.mxu0 0
    %520 = vmatprep.subr.bf16.mxu0 0
    %521 = vmatpush1.bf16.msra.mxu0 0
    %522 = vmatprep.subr.bf16.mxu0 0
    %523 = vmatpush1.bf16.msra.mxu0 0
    %524 = vmatprep.subr.bf16.mxu0 0
    %525 = vmatpush1.bf16.msra.mxu0 0
    %526 = vmatprep.subr.bf16.mxu0 0
    %527 = vmatpush1.bf16.msra.mxu0 0
    %528 = vmatprep.subr.bf16.mxu0 0
    %529 = vmatpush1.bf16.msra.mxu0 0
    %530 = vmatprep.mubr.bf16.mxu0 0
    %531 = vmatmul.mubr.bf16.gmra.mrb[0].mxu0 %v496
    %v532 = vpop.f32.mrb[0].mxu0
    %v533 = vadd.f32 0.0, %v532
    %v534 = vpop.f32.mrb[0].mxu0
    %v535 = vpop.f32.mrb[0].mxu0
    %v536 = vadd.f32 0.0, %v535
    %v537 = vpop.f32.mrb[0].mxu0
    %538 = vdwg.mxu0
    %539 = vst.msk [vmem:[#allocation2] sm:$0xff] %vm419, %v533
    %540 = vst.msk [vmem:[#allocation2 + $0x8] sm:$0xff] %vm419, %v536
    %542 = vrot.lane.b32.xlu0 %v416, 96
    %v543 = vpop.permute.xlu0 %542
    %545 = vrot.lane.b32.xlu0 %v417, 96
    %v546 = vpop.permute.xlu0 %545
    %v548 = vsel %vm419, %v543, 0
    %v551 = vsel %vm419, %v546, 0
    %553 = vmatprep.subr.bf16.mxu0 0
    %554 = vmatpush1.bf16.xpose.msra.mxu0 %v551
    %555 = vmatprep.subr.bf16.mxu0 0
    %556 = vmatpush1.bf16.xpose.msra.mxu0 0
    %557 = vmatprep.subr.bf16.mxu0 0
    %558 = vmatpush1.bf16.xpose.msra.mxu0 0
    %559 = vmatprep.subr.bf16.mxu0 0
    %560 = vmatpush1.bf16.xpose.msra.mxu0 0
    %561 = vmatprep.subr.bf16.mxu0 0
    %562 = vmatpush1.bf16.xpose.msra.mxu0 0
    %563 = vmatprep.subr.bf16.mxu0 0
    %564 = vmatpush1.bf16.xpose.msra.mxu0 0
    %565 = vmatprep.subr.bf16.mxu0 0
    %566 = vmatpush1.bf16.xpose.msra.mxu0 0
    %567 = vmatprep.subr.bf16.mxu0 0
    %568 = vmatpush1.bf16.xpose.msra.mxu0 0
    %569 = vmatprep.subr.bf16.mxu0 0
    %570 = vmatpush1.bf16.xpose.msra.mxu0 0
    %571 = vmatprep.subr.bf16.mxu0 0
    %572 = vmatpush1.bf16.xpose.msra.mxu0 0
    %573 = vmatprep.subr.bf16.mxu0 0
    %574 = vmatpush1.bf16.xpose.msra.mxu0 0
    %575 = vmatprep.subr.bf16.mxu0 0
    %576 = vmatpush1.bf16.xpose.msra.mxu0 0
    %577 = vmatprep.subr.bf16.mxu0 0
    %578 = vmatpush1.bf16.xpose.msra.mxu0 0
    %579 = vmatprep.subr.bf16.mxu0 0
    %580 = vmatpush1.bf16.xpose.msra.mxu0 0
    %581 = vmatprep.subr.bf16.mxu0 0
    %582 = vmatpush1.bf16.xpose.msra.mxu0 0
    %583 = vmatprep.subr.bf16.mxu0 0
    %584 = vmatpush1.bf16.xpose.msra.mxu0 0
    %585 = vmatprep.mubr.bf16.mxu0 0
    %586 = vmatmul.mubr.bf16.gmra.mrb[0].mxu0 %v548
    %v587 = vpop.f32.mrb[0].mxu0
    %v588 = vadd.f32 0.0, %v587
    %v589 = vpop.f32.mrb[0].mxu0
    %v590 = vpop.f32.mrb[0].mxu0
    %v591 = vadd.f32 0.0, %v590
    %v592 = vpop.f32.mrb[0].mxu0
    %593 = vdwg.mxu0
    %v594 = vmul.f32 %v588, 0.17677669
    %v595 = vmul.f32 %v591, 0.17677669
    %v596 = vadd.f32 %v594, %v152
    %v597 = vadd.f32 %v595, %v153
    %v598 = vsel %vm471, %v596, -inf
    %599 = vmax.xlane.f32.xlu0 %v598
    %v600 = vpop.xlane.xlu0 %599
    %v601 = vsel %vm471, %v597, -inf
    %602 = vmax.xlane.f32.xlu0 %v601
    %v603 = vpop.xlane.xlu0 %602
    %v604 = vsub.f32 %v596, %v600
    %v605 = vsub.f32 %v597, %v603
    %v606 = vmul.f32 %v604, 1.442695
    %v607 = vpow.pop %v606
    %v608 = vmul.f32 %v605, 1.442695
    %v609 = vpow.pop %v608
    %v610 = vsel %vm471, %v607, 0.0
    %611 = vadd.xlane.f32.xlu0 %v610
    %v612 = vpop.xlane.xlu0 %611
    %v613 = vsel %vm471, %v609, 0.0
    %614 = vadd.xlane.f32.xlu0 %v613
    %v615 = vpop.xlane.xlu0 %614
    %v616 = vrcp.pop %v612
    %v617 = vrcp.pop %v615
    %v618 = vmul.f32 %v607, %v616
    %v619 = vmul.f32 %v609, %v617
    %v620 = vpack.c.bf16 %v619, %v618
    %622 = vrot.lane.b32.xlu0 %v418, 96
    %v623 = vpop.permute.xlu0 %622
    %v626 = vsel %vm471, %v620, 0
    %628 = vmatprep.subr.bf16.mxu0 0
    %629 = vmatpush1.bf16.msra.mxu0 %v623
    %630 = vmatprep.subr.bf16.mxu0 0
    %631 = vmatpush1.bf16.msra.mxu0 0
    %632 = vmatprep.subr.bf16.mxu0 0
    %633 = vmatpush1.bf16.msra.mxu0 0
    %634 = vmatprep.subr.bf16.mxu0 0
    %635 = vmatpush1.bf16.msra.mxu0 0
    %636 = vmatprep.subr.bf16.mxu0 0
    %637 = vmatpush1.bf16.msra.mxu0 0
    %638 = vmatprep.subr.bf16.mxu0 0
    %639 = vmatpush1.bf16.msra.mxu0 0
    %640 = vmatprep.subr.bf16.mxu0 0
    %641 = vmatpush1.bf16.msra.mxu0 0
    %642 = vmatprep.subr.bf16.mxu0 0
    %643 = vmatpush1.bf16.msra.mxu0 0
    %644 = vmatprep.subr.bf16.mxu0 0
    %645 = vmatpush1.bf16.msra.mxu0 0
    %646 = vmatprep.subr.bf16.mxu0 0
    %647 = vmatpush1.bf16.msra.mxu0 0
    %648 = vmatprep.subr.bf16.mxu0 0
    %649 = vmatpush1.bf16.msra.mxu0 0
    %650 = vmatprep.subr.bf16.mxu0 0
    %651 = vmatpush1.bf16.msra.mxu0 0
    %652 = vmatprep.subr.bf16.mxu0 0
    %653 = vmatpush1.bf16.msra.mxu0 0
    %654 = vmatprep.subr.bf16.mxu0 0
    %655 = vmatpush1.bf16.msra.mxu0 0
    %656 = vmatprep.subr.bf16.mxu0 0
    %657 = vmatpush1.bf16.msra.mxu0 0
    %658 = vmatprep.subr.bf16.mxu0 0
    %659 = vmatpush1.bf16.msra.mxu0 0
    %660 = vmatprep.mubr.bf16.mxu0 0
    %661 = vmatmul.mubr.bf16.gmra.mrb[0].mxu0 %v626
    %v662 = vpop.f32.mrb[0].mxu0
    %v663 = vadd.f32 0.0, %v662
    %v664 = vpop.f32.mrb[0].mxu0
    %v665 = vpop.f32.mrb[0].mxu0
    %v666 = vadd.f32 0.0, %v665
    %v667 = vpop.f32.mrb[0].mxu0
    %668 = vdwg.mxu0
    %671 = vrot.lane.b32.xlu0 %v663, 32
    %v672 = vpop.permute.xlu0 %671
    %673 = vrot.lane.b32.xlu0 %v666, 32
    %v674 = vpop.permute.xlu0 %673
    %vm677 = vcmask 523520
    %678 = vst.msk [vmem:[#allocation2] sm:$0xff] %vm677, %v672
    %679 = vst.msk [vmem:[#allocation2 + $0x8] sm:$0xff] %vm677, %v674
    %680 = vrot.lane.b32.xlu0 %v416, 64
    %v681 = vpop.permute.xlu0 %680
    %682 = vrot.lane.b32.xlu0 %v417, 64
    %v683 = vpop.permute.xlu0 %682
    %v685 = vsel %vm419, %v681, 0
    %v688 = vsel %vm419, %v683, 0
    %690 = vmatprep.subr.bf16.mxu0 0
    %691 = vmatpush1.bf16.xpose.msra.mxu0 %v688
    %692 = vmatprep.subr.bf16.mxu0 0
    %693 = vmatpush1.bf16.xpose.msra.mxu0 0
    %694 = vmatprep.subr.bf16.mxu0 0
    %695 = vmatpush1.bf16.xpose.msra.mxu0 0
    %696 = vmatprep.subr.bf16.mxu0 0
    %697 = vmatpush1.bf16.xpose.msra.mxu0 0
    %698 = vmatprep.subr.bf16.mxu0 0
    %699 = vmatpush1.bf16.xpose.msra.mxu0 0
    %700 = vmatprep.subr.bf16.mxu0 0
    %701 = vmatpush1.bf16.xpose.msra.mxu0 0
    %702 = vmatprep.subr.bf16.mxu0 0
    %703 = vmatpush1.bf16.xpose.msra.mxu0 0
    %704 = vmatprep.subr.bf16.mxu0 0
    %705 = vmatpush1.bf16.xpose.msra.mxu0 0
    %706 = vmatprep.subr.bf16.mxu0 0
    %707 = vmatpush1.bf16.xpose.msra.mxu0 0
    %708 = vmatprep.subr.bf16.mxu0 0
    %709 = vmatpush1.bf16.xpose.msra.mxu0 0
    %710 = vmatprep.subr.bf16.mxu0 0
    %711 = vmatpush1.bf16.xpose.msra.mxu0 0
    %712 = vmatprep.subr.bf16.mxu0 0
    %713 = vmatpush1.bf16.xpose.msra.mxu0 0
    %714 = vmatprep.subr.bf16.mxu0 0
    %715 = vmatpush1.bf16.xpose.msra.mxu0 0
    %716 = vmatprep.subr.bf16.mxu0 0
    %717 = vmatpush1.bf16.xpose.msra.mxu0 0
    %718 = vmatprep.subr.bf16.mxu0 0
    %719 = vmatpush1.bf16.xpose.msra.mxu0 0
    %720 = vmatprep.subr.bf16.mxu0 0
    %721 = vmatpush1.bf16.xpose.msra.mxu0 0
    %722 = vmatprep.mubr.bf16.mxu0 0
    %723 = vmatmul.mubr.bf16.gmra.mrb[0].mxu0 %v685
    %v724 = vpop.f32.mrb[0].mxu0
    %v725 = vadd.f32 0.0, %v724
    %v726 = vpop.f32.mrb[0].mxu0
    %v727 = vpop.f32.mrb[0].mxu0
    %v728 = vadd.f32 0.0, %v727
    %v729 = vpop.f32.mrb[0].mxu0
    %730 = vdwg.mxu0
    %v731 = vmul.f32 %v725, 0.17677669
    %v732 = vmul.f32 %v728, 0.17677669
    %v733 = vadd.f32 %v731, %v152
    %v734 = vadd.f32 %v732, %v153
    %v735 = vsel %vm471, %v733, -inf
    %736 = vmax.xlane.f32.xlu0 %v735
    %v737 = vpop.xlane.xlu0 %736
    %v738 = vsel %vm471, %v734, -inf
    %739 = vmax.xlane.f32.xlu0 %v738
    %v740 = vpop.xlane.xlu0 %739
    %v741 = vsub.f32 %v733, %v737
    %v742 = vsub.f32 %v734, %v740
    %v743 = vmul.f32 %v741, 1.442695
    %v744 = vpow.pop %v743
    %v745 = vmul.f32 %v742, 1.442695
    %v746 = vpow.pop %v745
    %v747 = vsel %vm471, %v744, 0.0
    %748 = vadd.xlane.f32.xlu0 %v747
    %v749 = vpop.xlane.xlu0 %748
    %v750 = vsel %vm471, %v746, 0.0
    %751 = vadd.xlane.f32.xlu0 %v750
    %v752 = vpop.xlane.xlu0 %751
    %v753 = vrcp.pop %v749
    %v754 = vrcp.pop %v752
    %v755 = vmul.f32 %v744, %v753
    %v756 = vmul.f32 %v746, %v754
    %v757 = vpack.c.bf16 %v756, %v755
    %758 = vrot.lane.b32.xlu0 %v418, 64
    %v759 = vpop.permute.xlu0 %758
    %v762 = vsel %vm471, %v757, 0
    %764 = vmatprep.subr.bf16.mxu0 0
    %765 = vmatpush1.bf16.msra.mxu0 %v759
    %766 = vmatprep.subr.bf16.mxu0 0
    %767 = vmatpush1.bf16.msra.mxu0 0
    %768 = vmatprep.subr.bf16.mxu0 0
    %769 = vmatpush1.bf16.msra.mxu0 0
    %770 = vmatprep.subr.bf16.mxu0 0
    %771 = vmatpush1.bf16.msra.mxu0 0
    %772 = vmatprep.subr.bf16.mxu0 0
    %773 = vmatpush1.bf16.msra.mxu0 0
    %774 = vmatprep.subr.bf16.mxu0 0
    %775 = vmatpush1.bf16.msra.mxu0 0
    %776 = vmatprep.subr.bf16.mxu0 0
    %777 = vmatpush1.bf16.msra.mxu0 0
    %778 = vmatprep.subr.bf16.mxu0 0
    %779 = vmatpush1.bf16.msra.mxu0 0
    %780 = vmatprep.subr.bf16.mxu0 0
    %781 = vmatpush1.bf16.msra.mxu0 0
    %782 = vmatprep.subr.bf16.mxu0 0
    %783 = vmatpush1.bf16.msra.mxu0 0
    %784 = vmatprep.subr.bf16.mxu0 0
    %785 = vmatpush1.bf16.msra.mxu0 0
    %786 = vmatprep.subr.bf16.mxu0 0
    %787 = vmatpush1.bf16.msra.mxu0 0
    %788 = vmatprep.subr.bf16.mxu0 0
    %789 = vmatpush1.bf16.msra.mxu0 0
    %790 = vmatprep.subr.bf16.mxu0 0
    %791 = vmatpush1.bf16.msra.mxu0 0
    %792 = vmatprep.subr.bf16.mxu0 0
    %793 = vmatpush1.bf16.msra.mxu0 0
    %794 = vmatprep.subr.bf16.mxu0 0
    %795 = vmatpush1.bf16.msra.mxu0 0
    %796 = vmatprep.mubr.bf16.mxu0 0
    %797 = vmatmul.mubr.bf16.gmra.mrb[0].mxu0 %v762
    %v798 = vpop.f32.mrb[0].mxu0
    %v799 = vadd.f32 0.0, %v798
    %v800 = vpop.f32.mrb[0].mxu0
    %v801 = vpop.f32.mrb[0].mxu0
    %v802 = vadd.f32 0.0, %v801
    %v803 = vpop.f32.mrb[0].mxu0
    %804 = vdwg.mxu0
    %807 = vrot.lane.b32.xlu0 %v799, 64
    %v808 = vpop.permute.xlu0 %807
    %809 = vrot.lane.b32.xlu0 %v802, 64
    %v810 = vpop.permute.xlu0 %809
    %vm813 = vcmask 785920
    %814 = vst.msk [vmem:[#allocation2] sm:$0xff] %vm813, %v808
    %815 = vst.msk [vmem:[#allocation2 + $0x8] sm:$0xff] %vm813, %v810
    %816 = vrot.lane.b32.xlu0 %v416, 32
    %v817 = vpop.permute.xlu0 %816
    %818 = vrot.lane.b32.xlu0 %v417, 32
    %v819 = vpop.permute.xlu0 %818
    %v821 = vsel %vm419, %v817, 0
    %v824 = vsel %vm419, %v819, 0
    %826 = vmatprep.subr.bf16.mxu0 0
    %827 = vmatpush1.bf16.xpose.msra.mxu0 %v824
    %828 = vmatprep.subr.bf16.mxu0 0
    %829 = vmatpush1.bf16.xpose.msra.mxu0 0
    %830 = vmatprep.subr.bf16.mxu0 0
    %831 = vmatpush1.bf16.xpose.msra.mxu0 0
    %832 = vmatprep.subr.bf16.mxu0 0
    %833 = vmatpush1.bf16.xpose.msra.mxu0 0
    %834 = vmatprep.subr.bf16.mxu0 0
    %835 = vmatpush1.bf16.xpose.msra.mxu0 0
    %836 = vmatprep.subr.bf16.mxu0 0
    %837 = vmatpush1.bf16.xpose.msra.mxu0 0
    %838 = vmatprep.subr.bf16.mxu0 0
    %839 = vmatpush1.bf16.xpose.msra.mxu0 0
    %840 = vmatprep.subr.bf16.mxu0 0
    %841 = vmatpush1.bf16.xpose.msra.mxu0 0
    %842 = vmatprep.subr.bf16.mxu0 0
    %843 = vmatpush1.bf16.xpose.msra.mxu0 0
    %844 = vmatprep.subr.bf16.mxu0 0
    %845 = vmatpush1.bf16.xpose.msra.mxu0 0
    %846 = vmatprep.subr.bf16.mxu0 0
    %847 = vmatpush1.bf16.xpose.msra.mxu0 0
    %848 = vmatprep.subr.bf16.mxu0 0
    %849 = vmatpush1.bf16.xpose.msra.mxu0 0
    %850 = vmatprep.subr.bf16.mxu0 0
    %851 = vmatpush1.bf16.xpose.msra.mxu0 0
    %852 = vmatprep.subr.bf16.mxu0 0
    %853 = vmatpush1.bf16.xpose.msra.mxu0 0
    %854 = vmatprep.subr.bf16.mxu0 0
    %855 = vmatpush1.bf16.xpose.msra.mxu0 0
    %856 = vmatprep.subr.bf16.mxu0 0
    %857 = vmatpush1.bf16.xpose.msra.mxu0 0
    %858 = vmatprep.mubr.bf16.mxu0 0
    %859 = vmatmul.mubr.bf16.gmra.mrb[0].mxu0 %v821
    %v860 = vpop.f32.mrb[0].mxu0
    %v861 = vadd.f32 0.0, %v860
    %v862 = vpop.f32.mrb[0].mxu0
    %v863 = vpop.f32.mrb[0].mxu0
    %v864 = vadd.f32 0.0, %v863
    %v865 = vpop.f32.mrb[0].mxu0
    %866 = vdwg.mxu0
    %v867 = vmul.f32 %v861, 0.17677669
    %v868 = vmul.f32 %v864, 0.17677669
    %v869 = vadd.f32 %v867, %v152
    %v870 = vadd.f32 %v868, %v153
    %v871 = vsel %vm471, %v869, -inf
    %872 = vmax.xlane.f32.xlu0 %v871
    %v873 = vpop.xlane.xlu0 %872
    %v874 = vsel %vm471, %v870, -inf
    %875 = vmax.xlane.f32.xlu0 %v874
    %v876 = vpop.xlane.xlu0 %875
    %v877 = vsub.f32 %v869, %v873
    %v878 = vsub.f32 %v870, %v876
    %v879 = vmul.f32 %v877, 1.442695
    %v880 = vpow.pop %v879
    %v881 = vmul.f32 %v878, 1.442695
    %v882 = vpow.pop %v881
    %v883 = vsel %vm471, %v880, 0.0
    %884 = vadd.xlane.f32.xlu0 %v883
    %v885 = vpop.xlane.xlu0 %884
    %v886 = vsel %vm471, %v882, 0.0
    %887 = vadd.xlane.f32.xlu0 %v886
    %v888 = vpop.xlane.xlu0 %887
    %v889 = vrcp.pop %v885
    %v890 = vrcp.pop %v888
    %v891 = vmul.f32 %v880, %v889
    %v892 = vmul.f32 %v882, %v890
    %v893 = vpack.c.bf16 %v892, %v891
    %894 = vrot.lane.b32.xlu0 %v418, 32
    %v895 = vpop.permute.xlu0 %894
    %v898 = vsel %vm471, %v893, 0
    %900 = vmatprep.subr.bf16.mxu0 0
    %901 = vmatpush1.bf16.msra.mxu0 %v895
    %902 = vmatprep.subr.bf16.mxu0 0
    %903 = vmatpush1.bf16.msra.mxu0 0
    %904 = vmatprep.subr.bf16.mxu0 0
    %905 = vmatpush1.bf16.msra.mxu0 0
    %906 = vmatprep.subr.bf16.mxu0 0
    %907 = vmatpush1.bf16.msra.mxu0 0
    %908 = vmatprep.subr.bf16.mxu0 0
    %909 = vmatpush1.bf16.msra.mxu0 0
    %910 = vmatprep.subr.bf16.mxu0 0
    %911 = vmatpush1.bf16.msra.mxu0 0
    %912 = vmatprep.subr.bf16.mxu0 0
    %913 = vmatpush1.bf16.msra.mxu0 0
    %914 = vmatprep.subr.bf16.mxu0 0
    %915 = vmatpush1.bf16.msra.mxu0 0
    %916 = vmatprep.subr.bf16.mxu0 0
    %917 = vmatpush1.bf16.msra.mxu0 0
    %918 = vmatprep.subr.bf16.mxu0 0
    %919 = vmatpush1.bf16.msra.mxu0 0
    %920 = vmatprep.subr.bf16.mxu0 0
    %921 = vmatpush1.bf16.msra.mxu0 0
    %922 = vmatprep.subr.bf16.mxu0 0
    %923 = vmatpush1.bf16.msra.mxu0 0
    %924 = vmatprep.subr.bf16.mxu0 0
    %925 = vmatpush1.bf16.msra.mxu0 0
    %926 = vmatprep.subr.bf16.mxu0 0
    %927 = vmatpush1.bf16.msra.mxu0 0
    %928 = vmatprep.subr.bf16.mxu0 0
    %929 = vmatpush1.bf16.msra.mxu0 0
    %930 = vmatprep.subr.bf16.mxu0 0
    %931 = vmatpush1.bf16.msra.mxu0 0
    %932 = vmatprep.mubr.bf16.mxu0 0
    %933 = vmatmul.mubr.bf16.gmra.mrb[0].mxu0 %v898
    %v934 = vpop.f32.mrb[0].mxu0
    %v935 = vadd.f32 0.0, %v934
    %v936 = vpop.f32.mrb[0].mxu0
    %v937 = vpop.f32.mrb[0].mxu0
    %v938 = vadd.f32 0.0, %v937
    %v939 = vpop.f32.mrb[0].mxu0
    %940 = vdwg.mxu0
    %943 = vrot.lane.b32.xlu0 %v935, 96
    %v944 = vpop.permute.xlu0 %943
    %945 = vrot.lane.b32.xlu0 %v938, 96
    %v946 = vpop.permute.xlu0 %945
    %vm949 = vcmask 1048320
    %950 = vst.msk [vmem:[#allocation2] sm:$0xff] %vm949, %v944
    %951 = vst.msk [vmem:[#allocation2 + $0x8] sm:$0xff] %vm949, %v946
    %v952 = vld [vmem:[#allocation2] sm:$0xff]
    %v953 = vld [vmem:[#allocation2 + $0x8] sm:$0xff]
    %v954 = vpack.c.bf16 %v953, %v952
    %v955 = vld [vmem:[#allocation9] sm:$0xf]
    %v956 = vld [vmem:[#allocation9 + $0x4] sm:$0xf]
    %v957 = vld [vmem:[#allocation9 + $0x8] sm:$0xf]
    %v958 = vld [vmem:[#allocation9 + $0xc] sm:$0xf]
    %v959 = vld [vmem:[#allocation9 + $0x10] sm:$0xf]
    %v960 = vld [vmem:[#allocation9 + $0x14] sm:$0xf]
    %v961 = vld [vmem:[#allocation9 + $0x18] sm:$0xf]
    %v962 = vld [vmem:[#allocation9 + $0x1c] sm:$0xf]
    %v963 = vld [vmem:[#allocation9 + $0x20] sm:$0xf]
    %v964 = vld [vmem:[#allocation9 + $0x24] sm:$0xf]
    %v965 = vld [vmem:[#allocation9 + $0x28] sm:$0xf]
    %v966 = vld [vmem:[#allocation9 + $0x2c] sm:$0xf]
    %v967 = vld [vmem:[#allocation9 + $0x30] sm:$0xf]
    %v968 = vld [vmem:[#allocation9 + $0x34] sm:$0xf]
    %v969 = vld [vmem:[#allocation9 + $0x38] sm:$0xf]
    %v970 = vld [vmem:[#allocation9 + $0x3c] sm:$0xf]
    %v971 = vld [vmem:[%s5] sm:$0x1]
    %v973 = vlaneseq
    %v974 = vshrl.u32 %v973, 7
    %v975 = vsub.s32 0, %v974
    %v976 = vrot.slane %v971, %v975
    %v994 = vunpack.c.l.b16 %v955
    %v995 = vunpack.c.l.b16 %v956
    %v996 = vunpack.c.l.b16 %v957
    %v997 = vunpack.c.l.b16 %v958
    %v998 = vunpack.c.l.b16 %v959
    %v999 = vunpack.c.l.b16 %v960
    %v1000 = vunpack.c.l.b16 %v961
    %v1001 = vunpack.c.l.b16 %v962
    %v1002 = vunpack.c.l.b16 %v963
    %v1003 = vunpack.c.l.b16 %v964
    %v1004 = vunpack.c.l.b16 %v965
    %v1005 = vunpack.c.l.b16 %v966
    %v1006 = vunpack.c.l.b16 %v967
    %v1007 = vunpack.c.l.b16 %v968
    %v1008 = vunpack.c.l.b16 %v969
    %v1009 = vunpack.c.l.b16 %v970
    %v1010 = vpack.c.b16 %v995, %v994
    %v1011 = vpack.c.b16 %v997, %v996
    %v1012 = vpack.c.b16 %v999, %v998
    %v1013 = vpack.c.b16 %v1001, %v1000
    %v1014 = vpack.c.b16 %v1003, %v1002
    %v1015 = vpack.c.b16 %v1005, %v1004
    %v1016 = vpack.c.b16 %v1007, %v1006
    %v1017 = vpack.c.b16 %v1009, %v1008
    %1026 = vmatprep.subr.bf16.mxu0 0
    %1027 = vmatpush1.bf16.msra.mxu0 %v1010
    %1028 = vmatprep.subr.bf16.mxu0 0
    %1029 = vmatpush1.bf16.msra.mxu0 %v1011
    %1030 = vmatprep.subr.bf16.mxu0 0
    %1031 = vmatpush1.bf16.msra.mxu0 %v1012
    %1032 = vmatprep.subr.bf16.mxu0 0
    %1033 = vmatpush1.bf16.msra.mxu0 %v1013
    %1034 = vmatprep.subr.bf16.mxu0 0
    %1035 = vmatpush1.bf16.msra.mxu0 %v1014
    %1036 = vmatprep.subr.bf16.mxu0 0
    %1037 = vmatpush1.bf16.msra.mxu0 %v1015
    %1038 = vmatprep.subr.bf16.mxu0 0
    %1039 = vmatpush1.bf16.msra.mxu0 %v1016
    %1040 = vmatprep.subr.bf16.mxu0 0
    %1041 = vmatpush1.bf16.msra.mxu0 %v1017
    %1042 = vmatprep.subr.bf16.mxu0 0
    %1043 = vmatpush1.bf16.msra.mxu0 0
    %1044 = vmatprep.subr.bf16.mxu0 0
    %1045 = vmatpush1.bf16.msra.mxu0 0
    %1046 = vmatprep.subr.bf16.mxu0 0
    %1047 = vmatpush1.bf16.msra.mxu0 0
    %1048 = vmatprep.subr.bf16.mxu0 0
    %1049 = vmatpush1.bf16.msra.mxu0 0
    %1050 = vmatprep.subr.bf16.mxu0 0
    %1051 = vmatpush1.bf16.msra.mxu0 0
    %1052 = vmatprep.subr.bf16.mxu0 0
    %1053 = vmatpush1.bf16.msra.mxu0 0
    %1054 = vmatprep.subr.bf16.mxu0 0
    %1055 = vmatpush1.bf16.msra.mxu0 0
    %1056 = vmatprep.subr.bf16.mxu0 0
    %1057 = vmatpush1.bf16.msra.mxu0 0
    %1058 = vmatprep.mubr.bf16.mxu0 0
    %1059 = vmatmul.mubr.bf16.gmra.mrb[0].mxu0 %v954
    %v1060 = vpop.f32.mrb[0].mxu0
    %v1061 = vadd.f32 %v976, %v1060
    %v1062 = vpop.f32.mrb[0].mxu0
    %v1063 = vpop.f32.mrb[0].mxu0
    %v1064 = vadd.f32 %v976, %v1063
    %v1065 = vpop.f32.mrb[0].mxu0
    %1066 = vdwg.mxu0
    %v1067 = vadd.f32 %v150, %v1061
    %v1068 = vadd.f32 %v151, %v1064
    %v1069 = vld [vmem:[%s6] sm:$0x1]
    %v1070 = vld [vmem:[%s7] sm:$0x1]
    %1071 = vadd.xlane.f32.xlu0 %v1067
    %v1072 = vpop.xlane.xlu0 %1071
    %1073 = vadd.xlane.f32.xlu0 %v1068
    %v1074 = vpop.xlane.xlu0 %1073
    %v1075 = vrcp.pop 128.0
    %v1076 = vmul.f32 %v1072, %v1075
    %v1077 = vmul.f32 %v1074, %v1075
    %v1078 = vsub.f32 %v1067, %v1076
    %v1079 = vsub.f32 %v1068, %v1077
    %v1080 = vmul.f32 %v1078, %v1078
    %v1081 = vmul.f32 %v1079, %v1079
    %1082 = vadd.xlane.f32.xlu0 %v1080
    %v1083 = vpop.xlane.xlu0 %1082
    %1084 = vadd.xlane.f32.xlu0 %v1081
    %v1085 = vpop.xlane.xlu0 %1084
    %v1086 = vmul.f32 %v1083, %v1075
    %v1087 = vmul.f32 %v1085, %v1075
    %v1088 = vadd.f32 %v1086, 1e-12
    %v1089 = vadd.f32 %v1087, 1e-12
    %v1090 = vrsqrt.pop %v1088
    %v1091 = vrsqrt.pop %v1089
    %v1092 = vmul.f32 %v1078, %v1090
    %v1093 = vmul.f32 %v1079, %v1091
    %v1095 = vlaneseq
    %v1096 = vshrl.u32 %v1095, 7
    %v1097 = vsub.s32 0, %v1096
    %v1098 = vrot.slane %v1069, %v1097
    %v1100 = vmul.f32 %v1092, %v1098
    %v1101 = vmul.f32 %v1093, %v1098
    %v1103 = vlaneseq
    %v1104 = vshrl.u32 %v1103, 7
    %v1105 = vsub.s32 0, %v1104
    %v1106 = vrot.slane %v1070, %v1105
    %v1108 = vadd.f32 %v1100, %v1106
    %v1109 = vadd.f32 %v1101, %v1106
    %v1110 = vpack.c.bf16 %v1109, %v1108
    %v1111 = vld [vmem:[#allocation11] sm:$0xff]
    %v1112 = vld [vmem:[#allocation11 + $0x8] sm:$0xff]
    %v1113 = vld [vmem:[#allocation11 + $0x10] sm:$0xff]
    %v1114 = vld [vmem:[#allocation11 + $0x18] sm:$0xff]
    %v1115 = vld [vmem:[#allocation11 + $0x20] sm:$0xff]
    %v1116 = vld [vmem:[#allocation11 + $0x28] sm:$0xff]
    %v1117 = vld [vmem:[#allocation11 + $0x30] sm:$0xff]
    %v1118 = vld [vmem:[#allocation11 + $0x38] sm:$0xff]
    %v1119 = vld [vmem:[#allocation11 + $0x40] sm:$0xff]
    %v1120 = vld [vmem:[#allocation11 + $0x48] sm:$0xff]
    %v1121 = vld [vmem:[#allocation11 + $0x50] sm:$0xff]
    %v1122 = vld [vmem:[#allocation11 + $0x58] sm:$0xff]
    %v1123 = vld [vmem:[#allocation11 + $0x60] sm:$0xff]
    %v1124 = vld [vmem:[#allocation11 + $0x68] sm:$0xff]
    %v1125 = vld [vmem:[#allocation11 + $0x70] sm:$0xff]
    %v1126 = vld [vmem:[#allocation11 + $0x78] sm:$0xff]
    %v1127 = vld [vmem:[%s9] sm:$0x3]
    %v1129 = vlaneseq
    %v1130 = vshrl.u32 %v1129, 7
    %v1131 = vsub.s32 0, %v1130
    %v1132 = vrot.slane %v1127, %v1131
    %v1133 = vlaneseq
    %v1134 = vshrl.u32 %v1133, 7
    %v1135 = vsub.s32 1, %v1134
    %v1136 = vrot.slane %v1127, %v1135
    %v1155 = vunpack.c.l.b16 %v1111
    %v1156 = vunpack.c.h.b16 %v1111
    %v1157 = vunpack.c.l.b16 %v1112
    %v1158 = vunpack.c.h.b16 %v1112
    %v1159 = vunpack.c.l.b16 %v1113
    %v1160 = vunpack.c.h.b16 %v1113
    %v1161 = vunpack.c.l.b16 %v1114
    %v1162 = vunpack.c.h.b16 %v1114
    %v1163 = vunpack.c.l.b16 %v1115
    %v1164 = vunpack.c.h.b16 %v1115
    %v1165 = vunpack.c.l.b16 %v1116
    %v1166 = vunpack.c.h.b16 %v1116
    %v1167 = vunpack.c.l.b16 %v1117
    %v1168 = vunpack.c.h.b16 %v1117
    %v1169 = vunpack.c.l.b16 %v1118
    %v1170 = vunpack.c.h.b16 %v1118
    %v1171 = vunpack.c.l.b16 %v1119
    %v1172 = vunpack.c.h.b16 %v1119
    %v1173 = vunpack.c.l.b16 %v1120
    %v1174 = vunpack.c.h.b16 %v1120
    %v1175 = vunpack.c.l.b16 %v1121
    %v1176 = vunpack.c.h.b16 %v1121
    %v1177 = vunpack.c.l.b16 %v1122
    %v1178 = vunpack.c.h.b16 %v1122
    %v1179 = vunpack.c.l.b16 %v1123
    %v1180 = vunpack.c.h.b16 %v1123
    %v1181 = vunpack.c.l.b16 %v1124
    %v1182 = vunpack.c.h.b16 %v1124
    %v1183 = vunpack.c.l.b16 %v1125
    %v1184 = vunpack.c.h.b16 %v1125
    %v1185 = vunpack.c.l.b16 %v1126
    %v1186 = vunpack.c.h.b16 %v1126
    %v1187 = vpack.c.b16 %v1157, %v1155
    %v1188 = vpack.c.b16 %v1158, %v1156
    %v1189 = vpack.c.b16 %v1161, %v1159
    %v1190 = vpack.c.b16 %v1162, %v1160
    %v1191 = vpack.c.b16 %v1165, %v1163
    %v1192 = vpack.c.b16 %v1166, %v1164
    %v1193 = vpack.c.b16 %v1169, %v1167
    %v1194 = vpack.c.b16 %v1170, %v1168
    %v1195 = vpack.c.b16 %v1173, %v1171
    %v1196 = vpack.c.b16 %v1174, %v1172
    %v1197 = vpack.c.b16 %v1177, %v1175
    %v1198 = vpack.c.b16 %v1178, %v1176
    %v1199 = vpack.c.b16 %v1181, %v1179
    %v1200 = vpack.c.b16 %v1182, %v1180
    %v1201 = vpack.c.b16 %v1185, %v1183
    %v1202 = vpack.c.b16 %v1186, %v1184
    %1219 = vmatprep.subr.bf16.mxu0 %v1188
    %1220 = vmatpush1.bf16.msra.mxu0 %v1187
    %1221 = vmatprep.subr.bf16.mxu0 %v1190
    %1222 = vmatpush1.bf16.msra.mxu0 %v1189
    %1223 = vmatprep.subr.bf16.mxu0 %v1192
    %1224 = vmatpush1.bf16.msra.mxu0 %v1191
    %1225 = vmatprep.subr.bf16.mxu0 %v1194
    %1226 = vmatpush1.bf16.msra.mxu0 %v1193
    %1227 = vmatprep.subr.bf16.mxu0 %v1196
    %1228 = vmatpush1.bf16.msra.mxu0 %v1195
    %1229 = vmatprep.subr.bf16.mxu0 %v1198
    %1230 = vmatpush1.bf16.msra.mxu0 %v1197
    %1231 = vmatprep.subr.bf16.mxu0 %v1200
    %1232 = vmatpush1.bf16.msra.mxu0 %v1199
    %1233 = vmatprep.subr.bf16.mxu0 %v1202
    %1234 = vmatpush1.bf16.msra.mxu0 %v1201
    %1235 = vmatprep.subr.bf16.mxu0 0
    %1236 = vmatpush1.bf16.msra.mxu0 0
    %1237 = vmatprep.subr.bf16.mxu0 0
    %1238 = vmatpush1.bf16.msra.mxu0 0
    %1239 = vmatprep.subr.bf16.mxu0 0
    %1240 = vmatpush1.bf16.msra.mxu0 0
    %1241 = vmatprep.subr.bf16.mxu0 0
    %1242 = vmatpush1.bf16.msra.mxu0 0
    %1243 = vmatprep.subr.bf16.mxu0 0
    %1244 = vmatpush1.bf16.msra.mxu0 0
    %1245 = vmatprep.subr.bf16.mxu0 0
    %1246 = vmatpush1.bf16.msra.mxu0 0
    %1247 = vmatprep.subr.bf16.mxu0 0
    %1248 = vmatpush1.bf16.msra.mxu0 0
    %1249 = vmatprep.subr.bf16.mxu0 0
    %1250 = vmatpush1.bf16.msra.mxu0 0
    %1251 = vmatprep.mubr.bf16.mxu0 0
    %1252 = vmatmul.mubr.bf16.gmra.mrb[0].mxu0 %v1110
    %v1253 = vpop.f32.mrb[0].mxu0
    %v1254 = vadd.f32 %v1132, %v1253
    %v1255 = vpop.f32.mrb[0].mxu0
    %v1256 = vadd.f32 %v1136, %v1255
    %v1257 = vpop.f32.mrb[0].mxu0
    %v1258 = vadd.f32 %v1132, %v1257
    %v1259 = vpop.f32.mrb[0].mxu0
    %v1260 = vadd.f32 %v1136, %v1259
    %1261 = vdwg.mxu0
    %v1262 = vmul.f32 %v1254, 0.5
    %v1263 = vmul.f32 %v1256, 0.5
    %v1264 = vmul.f32 %v1258, 0.5
    %v1265 = vmul.f32 %v1260, 0.5
    %v1266 = vmul.f32 %v1254, 0.044715
    %v1267 = vmul.f32 %v1256, 0.044715
    %v1268 = vmul.f32 %v1258, 0.044715
    %v1269 = vmul.f32 %v1260, 0.044715
    %v1270 = vmul.f32 %v1266, %v1254
    %v1271 = vmul.f32 %v1267, %v1256
    %v1272 = vmul.f32 %v1268, %v1258
    %v1273 = vmul.f32 %v1269, %v1260
    %v1274 = vmul.f32 %v1270, %v1254
    %v1275 = vmul.f32 %v1271, %v1256
    %v1276 = vmul.f32 %v1272, %v1258
    %v1277 = vmul.f32 %v1273, %v1260
    %v1278 = vadd.f32 %v1254, %v1274
    %v1279 = vadd.f32 %v1256, %v1275
    %v1280 = vadd.f32 %v1258, %v1276
    %v1281 = vadd.f32 %v1260, %v1277
    %v1282 = vmul.f32 %v1278, 0.7978846
    %v1283 = vmul.f32 %v1279, 0.7978846
    %v1284 = vmul.f32 %v1280, 0.7978846
    %v1285 = vmul.f32 %v1281, 0.7978846
    %v1286 = vtanh.pop %v1282
    %v1287 = vtanh.pop %v1283
    %v1288 = vtanh.pop %v1284
    %v1289 = vtanh.pop %v1285
    %v1290 = vadd.f32 %v1286, 1.0
    %v1291 = vadd.f32 %v1287, 1.0
    %v1292 = vadd.f32 %v1288, 1.0
    %v1293 = vadd.f32 %v1289, 1.0
    %v1294 = vmul.f32 %v1262, %v1290
    %v1295 = vmul.f32 %v1263, %v1291
    %v1296 = vmul.f32 %v1264, %v1292
    %v1297 = vmul.f32 %v1265, %v1293
    %v1298 = vpack.c.bf16 %v1296, %v1294
    %v1299 = vpack.c.bf16 %v1297, %v1295
    %v1300 = vld [vmem:[#allocation12] sm:$0xf]
    %v1301 = vld [vmem:[#allocation12 + $0x4] sm:$0xf]
    %v1302 = vld [vmem:[#allocation12 + $0x8] sm:$0xf]
    %v1303 = vld [vmem:[#allocation12 + $0xc] sm:$0xf]
    %v1304 = vld [vmem:[#allocation12 + $0x10] sm:$0xf]
    %v1305 = vld [vmem:[#allocation12 + $0x14] sm:$0xf]
    %v1306 = vld [vmem:[#allocation12 + $0x18] sm:$0xf]
    %v1307 = vld [vmem:[#allocation12 + $0x1c] sm:$0xf]
    %v1308 = vld [vmem:[#allocation12 + $0x20] sm:$0xf]
    %v1309 = vld [vmem:[#allocation12 + $0x24] sm:$0xf]
    %v1310 = vld [vmem:[#allocation12 + $0x28] sm:$0xf]
    %v1311 = vld [vmem:[#allocation12 + $0x2c] sm:$0xf]
    %v1312 = vld [vmem:[#allocation12 + $0x30] sm:$0xf]
    %v1313 = vld [vmem:[#allocation12 + $0x34] sm:$0xf]
    %v1314 = vld [vmem:[#allocation12 + $0x38] sm:$0xf]
    %v1315 = vld [vmem:[#allocation12 + $0x3c] sm:$0xf]
    %v1316 = vld [vmem:[#allocation12 + $0x40] sm:$0xf]
    %v1317 = vld [vmem:[#allocation12 + $0x44] sm:$0xf]
    %v1318 = vld [vmem:[#allocation12 + $0x48] sm:$0xf]
    %v1319 = vld [vmem:[#allocation12 + $0x4c] sm:$0xf]
    %v1320 = vld [vmem:[#allocation12 + $0x50] sm:$0xf]
    %v1321 = vld [vmem:[#allocation12 + $0x54] sm:$0xf]
    %v1322 = vld [vmem:[#allocation12 + $0x58] sm:$0xf]
    %v1323 = vld [vmem:[#allocation12 + $0x5c] sm:$0xf]
    %v1324 = vld [vmem:[#allocation12 + $0x60] sm:$0xf]
    %v1325 = vld [vmem:[#allocation12 + $0x64] sm:$0xf]
    %v1326 = vld [vmem:[#allocation12 + $0x68] sm:$0xf]
    %v1327 = vld [vmem:[#allocation12 + $0x6c] sm:$0xf]
    %v1328 = vld [vmem:[#allocation12 + $0x70] sm:$0xf]
    %v1329 = vld [vmem:[#allocation12 + $0x74] sm:$0xf]
    %v1330 = vld [vmem:[#allocation12 + $0x78] sm:$0xf]
    %v1331 = vld [vmem:[#allocation12 + $0x7c] sm:$0xf]
    %v1332 = vld [vmem:[%s11] sm:$0x1]
    %v1334 = vlaneseq
    %v1335 = vshrl.u32 %v1334, 7
    %v1336 = vsub.s32 0, %v1335
    %v1337 = vrot.slane %v1332, %v1336
    %v1371 = vunpack.c.l.b16 %v1300
    %v1372 = vunpack.c.l.b16 %v1301
    %v1373 = vunpack.c.l.b16 %v1302
    %v1374 = vunpack.c.l.b16 %v1303
    %v1375 = vunpack.c.l.b16 %v1304
    %v1376 = vunpack.c.l.b16 %v1305
    %v1377 = vunpack.c.l.b16 %v1306
    %v1378 = vunpack.c.l.b16 %v1307
    %v1379 = vunpack.c.l.b16 %v1308
    %v1380 = vunpack.c.l.b16 %v1309
    %v1381 = vunpack.c.l.b16 %v1310
    %v1382 = vunpack.c.l.b16 %v1311
    %v1383 = vunpack.c.l.b16 %v1312
    %v1384 = vunpack.c.l.b16 %v1313
    %v1385 = vunpack.c.l.b16 %v1314
    %v1386 = vunpack.c.l.b16 %v1315
    %v1387 = vunpack.c.l.b16 %v1316
    %v1388 = vunpack.c.l.b16 %v1317
    %v1389 = vunpack.c.l.b16 %v1318
    %v1390 = vunpack.c.l.b16 %v1319
    %v1391 = vunpack.c.l.b16 %v1320
    %v1392 = vunpack.c.l.b16 %v1321
    %v1393 = vunpack.c.l.b16 %v1322
    %v1394 = vunpack.c.l.b16 %v1323
    %v1395 = vunpack.c.l.b16 %v1324
    %v1396 = vunpack.c.l.b16 %v1325
    %v1397 = vunpack.c.l.b16 %v1326
    %v1398 = vunpack.c.l.b16 %v1327
    %v1399 = vunpack.c.l.b16 %v1328
    %v1400 = vunpack.c.l.b16 %v1329
    %v1401 = vunpack.c.l.b16 %v1330
    %v1402 = vunpack.c.l.b16 %v1331
    %v1403 = vpack.c.b16 %v1372, %v1371
    %v1404 = vpack.c.b16 %v1374, %v1373
    %v1405 = vpack.c.b16 %v1376, %v1375
    %v1406 = vpack.c.b16 %v1378, %v1377
    %v1407 = vpack.c.b16 %v1380, %v1379
    %v1408 = vpack.c.b16 %v1382, %v1381
    %v1409 = vpack.c.b16 %v1384, %v1383
    %v1410 = vpack.c.b16 %v1386, %v1385
    %v1411 = vpack.c.b16 %v1388, %v1387
    %v1412 = vpack.c.b16 %v1390, %v1389
    %v1413 = vpack.c.b16 %v1392, %v1391
    %v1414 = vpack.c.b16 %v1394, %v1393
    %v1415 = vpack.c.b16 %v1396, %v1395
    %v1416 = vpack.c.b16 %v1398, %v1397
    %v1417 = vpack.c.b16 %v1400, %v1399
    %v1418 = vpack.c.b16 %v1402, %v1401
    %1435 = vmatprep.subr.bf16.mxu0 0
    %1436 = vmatpush1.bf16.msra.mxu0 %v1403
    %1437 = vmatprep.subr.bf16.mxu0 0
    %1438 = vmatpush1.bf16.msra.mxu0 %v1404
    %1439 = vmatprep.subr.bf16.mxu0 0
    %1440 = vmatpush1.bf16.msra.mxu0 %v1405
    %1441 = vmatprep.subr.bf16.mxu0 0
    %1442 = vmatpush1.bf16.msra.mxu0 %v1406
    %1443 = vmatprep.subr.bf16.mxu0 0
    %1444 = vmatpush1.bf16.msra.mxu0 %v1407
    %1445 = vmatprep.subr.bf16.mxu0 0
    %1446 = vmatpush1.bf16.msra.mxu0 %v1408
    %1447 = vmatprep.subr.bf16.mxu0 0
    %1448 = vmatpush1.bf16.msra.mxu0 %v1409
    %1449 = vmatprep.subr.bf16.mxu0 0
    %1450 = vmatpush1.bf16.msra.mxu0 %v1410
    %1451 = vmatprep.subr.bf16.mxu0 0
    %1452 = vmatpush1.bf16.msra.mxu0 %v1411
    %1453 = vmatprep.subr.bf16.mxu0 0
    %1454 = vmatpush1.bf16.msra.mxu0 %v1412
    %1455 = vmatprep.subr.bf16.mxu0 0
    %1456 = vmatpush1.bf16.msra.mxu0 %v1413
    %1457 = vmatprep.subr.bf16.mxu0 0
    %1458 = vmatpush1.bf16.msra.mxu0 %v1414
    %1459 = vmatprep.subr.bf16.mxu0 0
    %1460 = vmatpush1.bf16.msra.mxu0 %v1415
    %1461 = vmatprep.subr.bf16.mxu0 0
    %1462 = vmatpush1.bf16.msra.mxu0 %v1416
    %1463 = vmatprep.subr.bf16.mxu0 0
    %1464 = vmatpush1.bf16.msra.mxu0 %v1417
    %1465 = vmatprep.subr.bf16.mxu0 0
    %1466 = vmatpush1.bf16.msra.mxu0 %v1418
    %1467 = vmatprep.mubr.bf16.mxu0 %v1299
    %1468 = vmatmul.mubr.bf16.gmra.mrb[0].mxu0 %v1298
    %v1469 = vpop.f32.mrb[0].mxu0
    %v1470 = vadd.f32 %v1337, %v1469
    %v1471 = vpop.f32.mrb[0].mxu0
    %v1472 = vpop.f32.mrb[0].mxu0
    %v1473 = vadd.f32 %v1337, %v1472
    %v1474 = vpop.f32.mrb[0].mxu0
    %1475 = vdwg.mxu0
    %v1476 = vadd.f32 %v1470, %v1108
    %v1477 = vadd.f32 %v1473, %v1109
    %v1478 = vld [vmem:[%s12] sm:$0x1]
    %v1479 = vld [vmem:[%s13] sm:$0x1]
    %1480 = vadd.xlane.f32.xlu0 %v1476
    %v1481 = vpop.xlane.xlu0 %1480
    %1482 = vadd.xlane.f32.xlu0 %v1477
    %v1483 = vpop.xlane.xlu0 %1482
    %v1484 = vmul.f32 %v1481, %v1075
    %v1485 = vmul.f32 %v1483, %v1075
    %v1486 = vsub.f32 %v1476, %v1484
    %v1487 = vsub.f32 %v1477, %v1485
    %v1488 = vmul.f32 %v1486, %v1486
    %v1489 = vmul.f32 %v1487, %v1487
    %1490 = vadd.xlane.f32.xlu0 %v1488
    %v1491 = vpop.xlane.xlu0 %1490
    %1492 = vadd.xlane.f32.xlu0 %v1489
    %v1493 = vpop.xlane.xlu0 %1492
    %v1494 = vmul.f32 %v1491, %v1075
    %v1495 = vmul.f32 %v1493, %v1075
    %v1496 = vadd.f32 %v1494, 1e-12
    %v1497 = vadd.f32 %v1495, 1e-12
    %v1498 = vrsqrt.pop %v1496
    %v1499 = vrsqrt.pop %v1497
    %v1500 = vmul.f32 %v1486, %v1498
    %v1501 = vmul.f32 %v1487, %v1499
    %v1503 = vlaneseq
    %v1504 = vshrl.u32 %v1503, 7
    %v1505 = vsub.s32 0, %v1504
    %v1506 = vrot.slane %v1478, %v1505
    %v1508 = vmul.f32 %v1500, %v1506
    %v1509 = vmul.f32 %v1501, %v1506
    %v1511 = vlaneseq
    %v1512 = vshrl.u32 %v1511, 7
    %v1513 = vsub.s32 0, %v1512
    %v1514 = vrot.slane %v1479, %v1513
    %v1516 = vadd.f32 %v1508, %v1514
    %v1517 = vadd.f32 %v1509, %v1514
    %v1519 = vrot.slane %v1517, 7
    %vm1521 = vcmask 1040384
    %v1522 = vsel %vm1521, %v1516, %v1519
    %v1523 = vpack.c.bf16 %v1522, %v1522
    %v1524 = vld [vmem:[#allocation14] sm:$0xf]
    %v1525 = vld [vmem:[#allocation14 + $0x4] sm:$0xf]
    %v1526 = vld [vmem:[#allocation14 + $0x8] sm:$0xf]
    %v1527 = vld [vmem:[#allocation14 + $0xc] sm:$0xf]
    %v1528 = vld [vmem:[#allocation14 + $0x10] sm:$0xf]
    %v1529 = vld [vmem:[#allocation14 + $0x14] sm:$0xf]
    %v1530 = vld [vmem:[#allocation14 + $0x18] sm:$0xf]
    %v1531 = vld [vmem:[#allocation14 + $0x1c] sm:$0xf]
    %v1532 = vld [vmem:[#allocation14 + $0x20] sm:$0xf]
    %v1533 = vld [vmem:[#allocation14 + $0x24] sm:$0xf]
    %v1534 = vld [vmem:[#allocation14 + $0x28] sm:$0xf]
    %v1535 = vld [vmem:[#allocation14 + $0x2c] sm:$0xf]
    %v1536 = vld [vmem:[#allocation14 + $0x30] sm:$0xf]
    %v1537 = vld [vmem:[#allocation14 + $0x34] sm:$0xf]
    %v1538 = vld [vmem:[#allocation14 + $0x38] sm:$0xf]
    %v1539 = vld [vmem:[#allocation14 + $0x3c] sm:$0xf]
    %v1540 = vld [vmem:[%s15] sm:$0x1]
    %v1542 = vlaneseq
    %v1543 = vshrl.u32 %v1542, 7
    %v1544 = vsub.s32 0, %v1543
    %v1545 = vrot.slane %v1540, %v1544
    %v1563 = vunpack.c.l.b16 %v1524
    %v1564 = vunpack.c.l.b16 %v1525
    %v1565 = vunpack.c.l.b16 %v1526
    %v1566 = vunpack.c.l.b16 %v1527
    %v1567 = vunpack.c.l.b16 %v1528
    %v1568 = vunpack.c.l.b16 %v1529
    %v1569 = vunpack.c.l.b16 %v1530
    %v1570 = vunpack.c.l.b16 %v1531
    %v1571 = vunpack.c.l.b16 %v1532
    %v1572 = vunpack.c.l.b16 %v1533
    %v1573 = vunpack.c.l.b16 %v1534
    %v1574 = vunpack.c.l.b16 %v1535
    %v1575 = vunpack.c.l.b16 %v1536
    %v1576 = vunpack.c.l.b16 %v1537
    %v1577 = vunpack.c.l.b16 %v1538
    %v1578 = vunpack.c.l.b16 %v1539
    %v1579 = vpack.c.b16 %v1564, %v1563
    %v1580 = vpack.c.b16 %v1566, %v1565
    %v1581 = vpack.c.b16 %v1568, %v1567
    %v1582 = vpack.c.b16 %v1570, %v1569
    %v1583 = vpack.c.b16 %v1572, %v1571
    %v1584 = vpack.c.b16 %v1574, %v1573
    %v1585 = vpack.c.b16 %v1576, %v1575
    %v1586 = vpack.c.b16 %v1578, %v1577
    %1595 = vmatprep.subr.bf16.mxu0 0
    %1596 = vmatpush1.bf16.msra.mxu0 %v1579
    %1597 = vmatprep.subr.bf16.mxu0 0
    %1598 = vmatpush1.bf16.msra.mxu0 %v1580
    %1599 = vmatprep.subr.bf16.mxu0 0
    %1600 = vmatpush1.bf16.msra.mxu0 %v1581
    %1601 = vmatprep.subr.bf16.mxu0 0
    %1602 = vmatpush1.bf16.msra.mxu0 %v1582
    %1603 = vmatprep.subr.bf16.mxu0 0
    %1604 = vmatpush1.bf16.msra.mxu0 %v1583
    %1605 = vmatprep.subr.bf16.mxu0 0
    %1606 = vmatpush1.bf16.msra.mxu0 %v1584
    %1607 = vmatprep.subr.bf16.mxu0 0
    %1608 = vmatpush1.bf16.msra.mxu0 %v1585
    %1609 = vmatprep.subr.bf16.mxu0 0
    %1610 = vmatpush1.bf16.msra.mxu0 %v1586
    %1611 = vmatprep.subr.bf16.mxu0 0
    %1612 = vmatpush1.bf16.msra.mxu0 0
    %1613 = vmatprep.subr.bf16.mxu0 0
    %1614 = vmatpush1.bf16.msra.mxu0 0
    %1615 = vmatprep.subr.bf16.mxu0 0
    %1616 = vmatpush1.bf16.msra.mxu0 0
    %1617 = vmatprep.subr.bf16.mxu0 0
    %1618 = vmatpush1.bf16.msra.mxu0 0
    %1619 = vmatprep.subr.bf16.mxu0 0
    %1620 = vmatpush1.bf16.msra.mxu0 0
    %1621 = vmatprep.subr.bf16.mxu0 0
    %1622 = vmatpush1.bf16.msra.mxu0 0
    %1623 = vmatprep.subr.bf16.mxu0 0
    %1624 = vmatpush1.bf16.msra.mxu0 0
    %1625 = vmatprep.subr.bf16.mxu0 0
    %1626 = vmatpush1.bf16.msra.mxu0 0
    %1627 = vmatprep.mubr.bf16.mxu0 0
    %1628 = vmatmul.mubr.bf16.gmra.mrb[0].mxu0 %v1523
    %v1629 = vpop.f32.mrb[0].mxu0
    %v1630 = vadd.f32 %v1545, %v1629
    %v1631 = vpop.f32.mrb[0].mxu0
    %v1632 = vpop.f32.mrb[0].mxu0
    %v1633 = vpop.f32.mrb[0].mxu0
    %1634 = vdwg.mxu0
    %v1635 = vtanh.pop %v1630
    %1636 = vst [vmem:[#allocation15] sm:$0x3] %v1635
    // Predicated region
    $region94: #{tpu_custom_call.1} parent=1 // pred_check
      _
    $region95: #{tpu_custom_call.1} parent=1 // pred_check_branch
      %1638 = sbr.rel (0) target = $region97
    $region96: #{tpu_custom_call.1} parent=1 // pred_region
      %s1640 = ssub.s32 32, 32
      %1641 = vsyncadd [#allocation5], %s1640
      %s1643 = sshll.u32 [#allocation15], 4
      %s1644 = int_to_ptr.vmem [resolvable:$true] %s1643
      %1646 = dma.vmem_to_hbm [thread:$0]  %s1644, 32, %s16, [#allocation5]
    $region97: #{tpu_custom_call.1} parent=1 // pred_fallthru
      _
    // Predicated region
    $region98: #{tpu_custom_call.1} parent=1 // pred_check
      _
    $region99: #{tpu_custom_call.1} parent=1 // pred_check_branch
      %1648 = sbr.rel (0) target = $region101
    $region100: #{tpu_custom_call.1} parent=1 // pred_region
      %1649 = dma.done [#allocation5], 32
    $region101: #{tpu_custom_call.1} parent=1 // pred_fallthru
      _
    %1650 = vsyncpa [#allocation4], 1
    %1651 = vsyncpa [#allocation7], 1
    %1652 = vsyncpa [#allocation10], 1
    %1653 = vsyncpa [#allocation13], 1
    %1654 = vsyncpa [#allocation5], 1

</llo_original>
